<compile_context>
chip_gen: v6e
topology: v6e:2x2x1
jax: 0.10.0
libtpu: 0.0.40
codegen_flags: <defaults>
</compile_context>

<pallas_src>
import functools

import jax
import jax.numpy as jnp
import numpy as np
from jax import lax
from jax.experimental import pallas as pl
from jax.experimental.pallas import tpu as pltpu


def _round_up(v, m):
    return ((v + m - 1) // m) * m


def _attn_pool_kernel(compute_dtype, n_ref, x_ref, w_ref, o_ref):
    # n_ref : SMEM (1,) int32 -- original (unpadded) sequence length
    # x_ref : (pool_size, 1, d, tile_n)   one batch element / one n-tile
    # w_ref : (d, d)                      1x1 conv weight (out_ch, in_ch)
    # o_ref : (1, d, tile_n)
    pool_size, _, d, tile_n = x_ref.shape
    j = pl.program_id(1)
    n_valid = n_ref[0]

    # Global pool-column indices covered by this tile (built in-kernel: no
    # broadcast mask is ever DMA'd from HBM).
    pool_idx = lax.broadcasted_iota(jnp.int32, (1, tile_n), 1) + j * tile_n

    w_c = w_ref[...].astype(compute_dtype)
    x_slots = [x_ref[k, 0] for k in range(pool_size)]  # (d, tile_n) each

    # One weight-stationary MXU matmul for all pool slots:
    # (d, d) x (d, pool_size * tile_n), f32 accumulation.
    x_cat = jnp.concatenate([xk.astype(compute_dtype) for xk in x_slots], axis=-1)
    logits_cat = jnp.dot(w_c, x_cat, preferred_element_type=jnp.float32)

    mask_value = -jnp.finfo(jnp.float32).max
    logits = []
    for k in range(pool_size):
        lk = logits_cat[:, k * tile_n:(k + 1) * tile_n]          # tile-aligned slice
        padded = (pool_idx * pool_size + k) >= n_valid           # (1, tile_n) bool
        logits.append(jnp.where(padded, mask_value, lk))         # bcast over d rows

    if pool_size == 2:
        # softmax over a pair == sigmoid of the logit difference: 1 exp, 1 recip.
        z = jnp.minimum(logits[1] - logits[0], 80.0)             # avoid exp overflow
        e = jnp.exp(z)
        a0 = pl.reciprocal(1.0 + e, approx=True)                 # attn weight, slot 0
        out = (x_slots[0].astype(jnp.float32) * a0
               + x_slots[1].astype(jnp.float32) * (1.0 - a0))
    else:
        # TODO(synk): switch to an online softmax if pool_size ever grows large
        # (keeps live state at ~3 tiles instead of ~3*pool_size).
        m = logits[0]
        for lk in logits[1:]:
            m = jnp.maximum(m, lk)
        denom = jnp.zeros_like(m)
        acc = jnp.zeros_like(m)
        for k in range(pool_size):
            e = jnp.exp(logits[k] - m)
            denom = denom + e
            acc = acc + x_slots[k].astype(jnp.float32) * e
        out = acc * pl.reciprocal(denom, approx=True)

    o_ref[0] = out.astype(o_ref.dtype)


def attention_pool(x, w, pool_size=2, *, tile_n=512,
                   compute_dtype=jnp.bfloat16, out_dtype=None,
                   single_buffer_weight=True):
    """x: (b, d, n); w: (d, d) 1x1-conv weight (out_ch, in_ch)."""
    b, d, n = x.shape
    assert w.shape == (d, d)
    if out_dtype is None:
        out_dtype = x.dtype

    remainder = n % pool_size
    # Mirror the PyTorch module exactly: it pads by `remainder` (only yields a
    # multiple of pool_size when pool_size == 2 or remainder == 0).
    if remainder and (n + remainder) % pool_size != 0:
        raise ValueError(
            "AttentionPool pads by n % pool_size; this is only well-defined for "
            "pool_size == 2 (matching the reference PyTorch module).")
    n_pools = (n + remainder) // pool_size

    # Lane-aligned tile over the pooled-sequence axis (multiple of 128).
    tile_n = max(128, min(int(tile_n), _round_up(n_pools, 128)))
    tile_n = _round_up(tile_n, 128)
    n_pools_pad = _round_up(n_pools, tile_n)
    num_tiles = n_pools_pad // tile_n

    # Pad the sequence so it reshapes exactly into n_pools_pad pool columns.
    # Extra columns are fully masked in-kernel and sliced off below.
    total = n_pools_pad * pool_size
    if total != n:
        x = jnp.pad(x, ((0, 0), (0, 0), (0, total - n)))
    # rearrange 'b d (n p) -> p b d n' so every pool slot is a lane-contiguous slab.
    # TODO(synk): this transpose costs one extra HBM pass over x; fuse it into the
    # upstream producer (or handle pool pairs with even/odd lane masks + pltpu.roll
    # in-kernel) to remove it.
    x_p = jnp.moveaxis(x.reshape(b, d, n_pools_pad, pool_size), 3, 0)

    n_arr = jnp.array([n], dtype=jnp.int32)  # scalar-prefetch: original length

    # Explicit VMEM budget (v7x has only 64 MiB/TC): 2x-buffered x & out blocks,
    # weight, and f32 intermediates, with headroom, capped safely below 64 MiB.
    x_bytes = 2 * pool_size * d * tile_n * x.dtype.itemsize
    o_bytes = 2 * d * tile_n * jnp.dtype(out_dtype).itemsize
    w_bytes = 2 * d * d * w.dtype.itemsize
    tmp_bytes = (2 * pool_size + 6) * d * tile_n * 4
    vmem_limit = int(min(max(1.5 * (x_bytes + o_bytes + w_bytes + tmp_bytes),
                             32 * 1024 * 1024), 56 * 1024 * 1024))

    def build(w_buffer_count):
        w_kwargs = {}
        if w_buffer_count is not None:
            # Weight is grid-invariant; single-buffer it to free VMEM for larger tiles.
            w_kwargs["pipeline_mode"] = pl.Buffered(w_buffer_count)
        return pl.pallas_call(
            functools.partial(_attn_pool_kernel, compute_dtype),
            out_shape=jax.ShapeDtypeStruct((b, d, n_pools_pad), out_dtype),
            grid_spec=pltpu.PrefetchScalarGridSpec(
                num_scalar_prefetch=1,
                grid=(b, num_tiles),
                in_specs=[
                    pl.BlockSpec((pool_size, 1, d, tile_n),
                                 lambda i, j, n_s: (0, i, 0, j)),
                    pl.BlockSpec((d, d), lambda i, j, n_s: (0, 0), **w_kwargs),
                ],
                out_specs=pl.BlockSpec((1, d, tile_n),
                                       lambda i, j, n_s: (i, 0, j)),
            ),
            compiler_params=pltpu.CompilerParams(
                dimension_semantics=("parallel", "parallel"),
                vmem_limit_bytes=vmem_limit,
            ),
        )

    if single_buffer_weight:
        try:
            out = build(1)(n_arr, x_p, w)
        except Exception:
            # pl.Buffered(1) not supported on this JAX version -> default buffering.
            out = build(None)(n_arr, x_p, w)
    else:
        out = build(None)(n_arr, x_p, w)

    return out[:, :, :n_pools]


def attention_pool_ref(x, w, pool_size=2):
    """Pure-JAX (f32) reference matching the PyTorch forward."""
    b, d, n = x.shape
    remainder = n % pool_size
    if remainder > 0:
        x = jnp.pad(x, ((0, 0), (0, 0), (0, remainder)))
    n_pad = n + remainder
    n_pools = n_pad // pool_size
    xp = x.reshape(b, d, n_pools, pool_size)
    logits = jnp.einsum("oc,bcnp->bonp", w, xp)
    if remainder > 0:
        padded = (jnp.arange(n_pad) >= n).reshape(n_pools, pool_size)
        logits = jnp.where(padded[None, None], -jnp.finfo(jnp.float32).max, logits)
    attn = jax.nn.softmax(logits, axis=-1)
    return (xp * attn).sum(-1)


if __name__ == "__main__":
    key = jax.random.PRNGKey(0)
    b, d, pool_size = 2, 128, 2          # d = 128: MXU/lane aligned channel dim

    # Conv2d(dim, dim, 1, bias=False), dirac_ init then *= 2 -> weight == 2 * I
    w = (2.0 * jnp.eye(d, dtype=jnp.float32)).astype(jnp.bfloat16)

    k_even, k_odd = jax.random.split(key)

    # even-length sequence (no padding path); tile_n=128 -> multi-tile grid
    n_even = 510
    x_even = jax.random.normal(k_even, (b, d, n_even), jnp.float32).astype(jnp.bfloat16)
    out_even = jax.block_until_ready(
        attention_pool(x_even, w, pool_size=pool_size, tile_n=128,
                       out_dtype=jnp.float32))
    ref_even = attention_pool_ref(x_even.astype(jnp.float32),
                                  w.astype(jnp.float32), pool_size=pool_size)
    np.testing.assert_allclose(np.asarray(out_even), np.asarray(ref_even),
                               rtol=2e-2, atol=2e-2)

    # odd-length sequence (exercises the padding + in-kernel mask path)
    n_odd = 509
    x_odd = jax.random.normal(k_odd, (b, d, n_odd), jnp.float32).astype(jnp.bfloat16)
    out_odd = jax.block_until_ready(
        attention_pool(x_odd, w, pool_size=pool_size, tile_n=128,
                       out_dtype=jnp.float32))
    ref_odd = attention_pool_ref(x_odd.astype(jnp.float32),
                                 w.astype(jnp.float32), pool_size=pool_size)
    np.testing.assert_allclose(np.asarray(out_odd), np.asarray(ref_odd),
                               rtol=2e-2, atol=2e-2)

    print("KERNEL_OK")
</pallas_src>

<mosaic_0001>
module attributes {stable_mosaic.version = 11 : i64} {
  func.func @_attn_pool_kernel(%arg0: i32, %arg1: i32, %arg2: memref<1xi32, #tpu.memory_space<smem>>, %arg3: memref<2x1x128x128xbf16, #tpu.memory_space<vmem>>, %arg4: memref<128x128xbf16, #tpu.memory_space<vmem>>, %arg5: memref<1x128x128xf32, #tpu.memory_space<vmem>>) attributes {dimension_semantics = [#tpu.dimension_semantics<parallel>, #tpu.dimension_semantics<parallel>], iteration_bounds = array<i64: 2, 2>, scalar_prefetch = 1 : i64, scratch_operands = 0 : i64, tpu.core_type = #tpu.core_type<tc>, window_params = [{transform_indices = @transform_0, window_bounds = array<i64: 2, 1, 128, 128>}, {pipeline_mode = #tpu.pipeline_mode<synchronous>, transform_indices = @transform_1, window_bounds = array<i64: 128, 128>}, {transform_indices = @transform_2, window_bounds = array<i64: 1, 128, 128>}]} {
    %c0 = arith.constant 0 : index
    %0 = memref.load %arg2[%c0] : memref<1xi32, #tpu.memory_space<smem>>
    %1 = tpu.iota {dimensions = array<i32: 1>} : vector<1x128xi32>
    %c128_i32 = arith.constant 128 : i32
    %2 = arith.muli %arg1, %c128_i32 : i32
    %3 = vector.broadcast %2 : i32 to vector<1x128xi32>
    %4 = arith.addi %1, %3 : vector<1x128xi32>
    %c0_0 = arith.constant 0 : index
    %c0_1 = arith.constant 0 : index
    %5 = vector.load %arg4[%c0_0, %c0_1] : memref<128x128xbf16, #tpu.memory_space<vmem>>, vector<128x128xbf16>
    %c0_2 = arith.constant 0 : index
    %c0_3 = arith.constant 0 : index
    %c0_4 = arith.constant 0 : index
    %c0_5 = arith.constant 0 : index
    %6 = vector.load %arg3[%c0_2, %c0_3, %c0_4, %c0_5] : memref<2x1x128x128xbf16, #tpu.memory_space<vmem>>, vector<1x1x128x128xbf16>
    %7 = vector.shape_cast %6 : vector<1x1x128x128xbf16> to vector<128x128xbf16>
    %c1 = arith.constant 1 : index
    %c0_6 = arith.constant 0 : index
    %c0_7 = arith.constant 0 : index
    %c0_8 = arith.constant 0 : index
    %8 = vector.load %arg3[%c1, %c0_6, %c0_7, %c0_8] : memref<2x1x128x128xbf16, #tpu.memory_space<vmem>>, vector<1x1x128x128xbf16>
    %9 = vector.shape_cast %8 : vector<1x1x128x128xbf16> to vector<128x128xbf16>
    %10 = tpu.concatenate %7, %9 in 1 : vector<128x128xbf16>, vector<128x128xbf16> -> vector<128x256xbf16>
    %cst = arith.constant dense<0.000000e+00> : vector<128x256xf32>
    %11 = tpu.matmul %5, %10, %cst {dimension_numbers = #tpu.dot_dimension_numbers<[1], [0], [0], [1], [0, 0, 1, 1], [], []>} : vector<128x128xbf16>, vector<128x256xbf16>, vector<128x256xf32> -> vector<128x256xf32>
    %12 = vector.extract_strided_slice %11 {offsets = [0, 0], sizes = [128, 128], strides = [1, 1]} : vector<128x256xf32> to vector<128x128xf32>
    %c2_i32 = arith.constant 2 : i32
    %13 = vector.broadcast %c2_i32 : i32 to vector<1x128xi32>
    %14 = arith.muli %4, %13 : vector<1x128xi32>
    %c0_i32 = arith.constant 0 : i32
    %15 = vector.broadcast %c0_i32 : i32 to vector<1x128xi32>
    %16 = arith.addi %14, %15 : vector<1x128xi32>
    %17 = vector.broadcast %0 : i32 to vector<1x128xi32>
    %18 = arith.cmpi sge, %16, %17 : vector<1x128xi32>
    %cst_9 = arith.constant -3.40282347E+38 : f32
    %19 = vector.shape_cast %18 : vector<1x128xi1> to vector<1x128xi1>
    %20 = vector.broadcast %19 : vector<1x128xi1> to vector<128x128xi1>
    %21 = vector.broadcast %cst_9 : f32 to vector<128x128xf32>
    %22 = arith.select %20, %21, %12 : vector<128x128xi1>, vector<128x128xf32>
    %23 = vector.extract_strided_slice %11 {offsets = [0, 128], sizes = [128, 128], strides = [1, 1]} : vector<128x256xf32> to vector<128x128xf32>
    %c2_i32_10 = arith.constant 2 : i32
    %24 = vector.broadcast %c2_i32_10 : i32 to vector<1x128xi32>
    %25 = arith.muli %4, %24 : vector<1x128xi32>
    %c1_i32 = arith.constant 1 : i32
    %26 = vector.broadcast %c1_i32 : i32 to vector<1x128xi32>
    %27 = arith.addi %25, %26 : vector<1x128xi32>
    %28 = vector.broadcast %0 : i32 to vector<1x128xi32>
    %29 = arith.cmpi sge, %27, %28 : vector<1x128xi32>
    %cst_11 = arith.constant -3.40282347E+38 : f32
    %30 = vector.shape_cast %29 : vector<1x128xi1> to vector<1x128xi1>
    %31 = vector.broadcast %30 : vector<1x128xi1> to vector<128x128xi1>
    %32 = vector.broadcast %cst_11 : f32 to vector<128x128xf32>
    %33 = arith.select %31, %32, %23 : vector<128x128xi1>, vector<128x128xf32>
    %34 = arith.subf %33, %22 : vector<128x128xf32>
    %cst_12 = arith.constant 8.000000e+01 : f32
    %35 = vector.broadcast %cst_12 : f32 to vector<128x128xf32>
    %36 = arith.minimumf %34, %35 : vector<128x128xf32>
    %37 = math.exp %36 : vector<128x128xf32>
    %cst_13 = arith.constant 1.000000e+00 : f32
    %38 = vector.broadcast %cst_13 : f32 to vector<128x128xf32>
    %39 = arith.addf %38, %37 : vector<128x128xf32>
    %40 = tpu.reciprocal %39 {approx = true} : vector<128x128xf32> -> vector<128x128xf32>
    %41 = arith.extf %7 : vector<128x128xbf16> to vector<128x128xf32>
    %42 = arith.mulf %41, %40 : vector<128x128xf32>
    %43 = arith.extf %9 : vector<128x128xbf16> to vector<128x128xf32>
    %cst_14 = arith.constant 1.000000e+00 : f32
    %44 = vector.broadcast %cst_14 : f32 to vector<128x128xf32>
    %45 = arith.subf %44, %40 : vector<128x128xf32>
    %46 = arith.mulf %43, %45 : vector<128x128xf32>
    %47 = arith.addf %42, %46 : vector<128x128xf32>
    %c0_15 = arith.constant 0 : index
    %c0_16 = arith.constant 0 : index
    %c0_17 = arith.constant 0 : index
    %48 = vector.load %arg5[%c0_15, %c0_16, %c0_17] : memref<1x128x128xf32, #tpu.memory_space<vmem>>, vector<1x128x128xf32>
    %49 = vector.shape_cast %48 : vector<1x128x128xf32> to vector<128x128xf32>
    %50 = vector.shape_cast %47 : vector<128x128xf32> to vector<1x128x128xf32>
    tpu.vector_store %arg5[%c0_15, %c0_16, %c0_17], %50 {strides = array<i32>} : memref<1x128x128xf32, #tpu.memory_space<vmem>>, vector<1x128x128xf32>,
    return
  }
  func.func @transform_0(%arg0: i32, %arg1: i32, %arg2: memref<1xi32, #tpu.memory_space<smem>>) -> (i32, i32, i32, i32) {
    %c0_i32 = arith.constant 0 : i32
    %c0_i32_0 = arith.constant 0 : i32
    %c0_i32_1 = arith.constant 0 : i32
    return %c0_i32, %arg0, %c0_i32_0, %arg1 : i32, i32, i32, i32
  }
  func.func @transform_1(%arg0: i32, %arg1: i32, %arg2: memref<1xi32, #tpu.memory_space<smem>>) -> (i32, i32) {
    %c0_i32 = arith.constant 0 : i32
    %c0_i32_0 = arith.constant 0 : i32
    %c0_i32_1 = arith.constant 0 : i32
    return %c0_i32, %c0_i32_0 : i32, i32
  }
  func.func @transform_2(%arg0: i32, %arg1: i32, %arg2: memref<1xi32, #tpu.memory_space<smem>>) -> (i32, i32, i32) {
    %c0_i32 = arith.constant 0 : i32
    %c0_i32_0 = arith.constant 0 : i32
    return %arg0, %c0_i32, %arg1 : i32, i32, i32
  }
}

module attributes {stable_mosaic.version = 11 : i64} {
  func.func @_attn_pool_kernel(%arg0: i32, %arg1: i32, %arg2: memref<1xi32, #tpu.memory_space<smem>>, %arg3: memref<2x1x128x128xbf16, #tpu.memory_space<vmem>>, %arg4: memref<128x128xbf16, #tpu.memory_space<vmem>>, %arg5: memref<1x128x128xf32, #tpu.memory_space<vmem>>) attributes {dimension_semantics = [#tpu.dimension_semantics<parallel>, #tpu.dimension_semantics<parallel>], iteration_bounds = array<i64: 2, 2>, scalar_prefetch = 1 : i64, scratch_operands = 0 : i64, tpu.core_type = #tpu.core_type<tc>, window_params = [{transform_indices = @transform_0, window_bounds = array<i64: 2, 1, 128, 128>}, {pipeline_mode = #tpu.pipeline_mode<synchronous>, transform_indices = @transform_1, window_bounds = array<i64: 128, 128>}, {transform_indices = @transform_2, window_bounds = array<i64: 1, 128, 128>}]} {
    %c0 = arith.constant 0 : index
    %0 = memref.load %arg2[%c0] : memref<1xi32, #tpu.memory_space<smem>>
    %1 = tpu.iota {dimensions = array<i32: 1>} : vector<1x128xi32>
    %c128_i32 = arith.constant 128 : i32
    %2 = arith.muli %arg1, %c128_i32 : i32
    %3 = vector.broadcast %2 : i32 to vector<1x128xi32>
    %4 = arith.addi %1, %3 : vector<1x128xi32>
    %c0_0 = arith.constant 0 : index
    %c0_1 = arith.constant 0 : index
    %5 = vector.load %arg4[%c0_0, %c0_1] : memref<128x128xbf16, #tpu.memory_space<vmem>>, vector<128x128xbf16>
    %c0_2 = arith.constant 0 : index
    %c0_3 = arith.constant 0 : index
    %c0_4 = arith.constant 0 : index
    %c0_5 = arith.constant 0 : index
    %6 = vector.load %arg3[%c0_2, %c0_3, %c0_4, %c0_5] : memref<2x1x128x128xbf16, #tpu.memory_space<vmem>>, vector<1x1x128x128xbf16>
    %7 = vector.shape_cast %6 : vector<1x1x128x128xbf16> to vector<128x128xbf16>
    %c1 = arith.constant 1 : index
    %c0_6 = arith.constant 0 : index
    %c0_7 = arith.constant 0 : index
    %c0_8 = arith.constant 0 : index
    %8 = vector.load %arg3[%c1, %c0_6, %c0_7, %c0_8] : memref<2x1x128x128xbf16, #tpu.memory_space<vmem>>, vector<1x1x128x128xbf16>
    %9 = vector.shape_cast %8 : vector<1x1x128x128xbf16> to vector<128x128xbf16>
    %10 = tpu.concatenate %7, %9 in 1 : vector<128x128xbf16>, vector<128x128xbf16> -> vector<128x256xbf16>
    %cst = arith.constant dense<0.000000e+00> : vector<128x256xf32>
    %11 = tpu.matmul %5, %10, %cst {dimension_numbers = #tpu.dot_dimension_numbers<[1], [0], [0], [1], [0, 0, 1, 1], [], []>} : vector<128x128xbf16>, vector<128x256xbf16>, vector<128x256xf32> -> vector<128x256xf32>
    %12 = vector.extract_strided_slice %11 {offsets = [0, 0], sizes = [128, 128], strides = [1, 1]} : vector<128x256xf32> to vector<128x128xf32>
    %c2_i32 = arith.constant 2 : i32
    %13 = vector.broadcast %c2_i32 : i32 to vector<1x128xi32>
    %14 = arith.muli %4, %13 : vector<1x128xi32>
    %c0_i32 = arith.constant 0 : i32
    %15 = vector.broadcast %c0_i32 : i32 to vector<1x128xi32>
    %16 = arith.addi %14, %15 : vector<1x128xi32>
    %17 = vector.broadcast %0 : i32 to vector<1x128xi32>
    %18 = arith.cmpi sge, %16, %17 : vector<1x128xi32>
    %cst_9 = arith.constant -3.40282347E+38 : f32
    %19 = vector.shape_cast %18 : vector<1x128xi1> to vector<1x128xi1>
    %20 = vector.broadcast %19 : vector<1x128xi1> to vector<128x128xi1>
    %21 = vector.broadcast %cst_9 : f32 to vector<128x128xf32>
    %22 = arith.select %20, %21, %12 : vector<128x128xi1>, vector<128x128xf32>
    %23 = vector.extract_strided_slice %11 {offsets = [0, 128], sizes = [128, 128], strides = [1, 1]} : vector<128x256xf32> to vector<128x128xf32>
    %c2_i32_10 = arith.constant 2 : i32
    %24 = vector.broadcast %c2_i32_10 : i32 to vector<1x128xi32>
    %25 = arith.muli %4, %24 : vector<1x128xi32>
    %c1_i32 = arith.constant 1 : i32
    %26 = vector.broadcast %c1_i32 : i32 to vector<1x128xi32>
    %27 = arith.addi %25, %26 : vector<1x128xi32>
    %28 = vector.broadcast %0 : i32 to vector<1x128xi32>
    %29 = arith.cmpi sge, %27, %28 : vector<1x128xi32>
    %cst_11 = arith.constant -3.40282347E+38 : f32
    %30 = vector.shape_cast %29 : vector<1x128xi1> to vector<1x128xi1>
    %31 = vector.broadcast %30 : vector<1x128xi1> to vector<128x128xi1>
    %32 = vector.broadcast %cst_11 : f32 to vector<128x128xf32>
    %33 = arith.select %31, %32, %23 : vector<128x128xi1>, vector<128x128xf32>
    %34 = arith.subf %33, %22 : vector<128x128xf32>
    %cst_12 = arith.constant 8.000000e+01 : f32
    %35 = vector.broadcast %cst_12 : f32 to vector<128x128xf32>
    %36 = arith.minimumf %34, %35 : vector<128x128xf32>
    %37 = math.exp %36 : vector<128x128xf32>
    %cst_13 = arith.constant 1.000000e+00 : f32
    %38 = vector.broadcast %cst_13 : f32 to vector<128x128xf32>
    %39 = arith.addf %38, %37 : vector<128x128xf32>
    %40 = tpu.reciprocal %39 {approx = true} : vector<128x128xf32> -> vector<128x128xf32>
    %41 = arith.extf %7 : vector<128x128xbf16> to vector<128x128xf32>
    %42 = arith.mulf %41, %40 : vector<128x128xf32>
    %43 = arith.extf %9 : vector<128x128xbf16> to vector<128x128xf32>
    %cst_14 = arith.constant 1.000000e+00 : f32
    %44 = vector.broadcast %cst_14 : f32 to vector<128x128xf32>
    %45 = arith.subf %44, %40 : vector<128x128xf32>
    %46 = arith.mulf %43, %45 : vector<128x128xf32>
    %47 = arith.addf %42, %46 : vector<128x128xf32>
    %c0_15 = arith.constant 0 : index
    %c0_16 = arith.constant 0 : index
    %c0_17 = arith.constant 0 : index
    %48 = vector.load %arg5[%c0_15, %c0_16, %c0_17] : memref<1x128x128xf32, #tpu.memory_space<vmem>>, vector<1x128x128xf32>
    %49 = vector.shape_cast %48 : vector<1x128x128xf32> to vector<128x128xf32>
    %50 = vector.shape_cast %47 : vector<128x128xf32> to vector<1x128x128xf32>
    tpu.vector_store %arg5[%c0_15, %c0_16, %c0_17], %50 {strides = array<i32>} : memref<1x128x128xf32, #tpu.memory_space<vmem>>, vector<1x128x128xf32>,
    return
  }
  func.func @transform_0(%arg0: i32, %arg1: i32, %arg2: memref<1xi32, #tpu.memory_space<smem>>) -> (i32, i32, i32, i32) {
    %c0_i32 = arith.constant 0 : i32
    %c0_i32_0 = arith.constant 0 : i32
    %c0_i32_1 = arith.constant 0 : i32
    return %c0_i32, %arg0, %c0_i32_0, %arg1 : i32, i32, i32, i32
  }
  func.func @transform_1(%arg0: i32, %arg1: i32, %arg2: memref<1xi32, #tpu.memory_space<smem>>) -> (i32, i32) {
    %c0_i32 = arith.constant 0 : i32
    %c0_i32_0 = arith.constant 0 : i32
    %c0_i32_1 = arith.constant 0 : i32
    return %c0_i32, %c0_i32_0 : i32, i32
  }
  func.func @transform_2(%arg0: i32, %arg1: i32, %arg2: memref<1xi32, #tpu.memory_space<smem>>) -> (i32, i32, i32) {
    %c0_i32 = arith.constant 0 : i32
    %c0_i32_0 = arith.constant 0 : i32
    return %arg0, %c0_i32, %arg1 : i32, i32, i32
  }
}

</mosaic_0001>

<llo_original>
// kernel: tpu_custom_call.1
$region0: #{tpu_custom_call.1}
  #allocation0 [shape = 'u32[]', space=smem, size = 0x4, offset = 0x4, fixed_abs, tag = 'smem constant byte address 0x4 - core index']
  #allocation1 [shape = 'u32[144,128]{1,0:T(1,128)}', space=vmem, size = 0x12000, scoped, tag = 'internal scratch']
  #allocation2 [shape = 's32[1]{0}', space=sflag, size = 0x4, scoped, tag = 'scoped memory for tpu_custom_call.1']
  #allocation3 [shape = 's32[1]{0:T(128)S(6)}', space=smem, size = 0x200, scoped, tag = 'prefetched SMEM operand 0']
  #allocation10 [shape = 's32[]', space=sflag, size = 0x4, offset = 0, fixed_abs, tag = 'sflag constant byte address 0x0 - dummy sync flag']
  %s0 = inlined_call_operand.<no memory space> [shape: s32[1], index: 0, kind: input, shape index: {}]
  %s1 = inlined_call_operand.hbm [shape: bf16[2,2,128,256], index: 1, kind: input, shape index: {}]
  %s2 = inlined_call_operand.hbm [shape: bf16[128,128], index: 2, kind: input, shape index: {}]
  %s3 = inlined_call_operand.hbm [shape: f32[2,128,256], index: 3, kind: output, shape index: {}]
  %s4 = sld [smem:[#allocation0]]
  $region49: #{tpu_custom_call.1} parent=0
    _
  %s6 = ssub.s32 1, %s4
  %s7 = scalar_select 0, %s6, %s4
  %8 = sst [smem:[#allocation3]] %s0
  $region1: #{tpu_custom_call.1} parent=0
    #allocation4 [shape = 'u8[131072]{0}', space=vmem, size = 0x20000, scoped, tag = 'input window, operand 1']
    #allocation5 [shape = 's32[2]{0}', space=sflag, size = 0x8, scoped, tag = 'scoped memory for tpu_custom_call.1']
    #allocation6 [shape = 's32[2]{0}', space=sflag, size = 0x8, scoped, tag = 'scoped memory for tpu_custom_call.1']
    #allocation7 [shape = 'u8[32768]{0}', space=vmem, size = 0x8000, scoped, tag = 'input window, operand 2, single buffered']
    #allocation8 [shape = 's32[1]{0}', space=sflag, size = 0x4, scoped, tag = 'scoped memory for tpu_custom_call.1']
    #allocation9 [shape = 'u8[131072]{0}', space=vmem, size = 0x20000, scoped, tag = 'output window, operand 0']
    %9 = vsyncpa [#allocation5], 0
    %s10 = scalar_lea.sflag [#allocation5], 1
    %11 = vsyncpa %s10, 0
    %12 = vsyncpa [#allocation8], 0
    %13 = vsyncpa [#allocation6], 0
    %s14 = scalar_lea.sflag [#allocation6], 1
    %15 = vsyncpa %s14, 0
    loop: start=0, step=1, limit=6
    $region2: #{tpu_custom_call.1} parent=1 // loop_pre_header
      _
    $region3: #{tpu_custom_call.1} parent=1 // loop_header
      %s17 = sphi 0, %s21
      %p18 = scmp.ge.s32.totalorder %s17, 6
      %s24 = sphi 0, %s36
      %s25 = sphi 0, %s32
      %s26 = sphi 0, %s24
      %s27 = sphi 0, %s25
      %s28 = sphi 0, %s26
      %s29 = sphi 0, %s27
      %s41 = sphi 0, %s43
      %s44 = sphi 0, %s41
      %s45 = sphi 0, %s44
      %s61 = sphi 0, %s45
      %s65 = sphi 0, %s65
      %s67 = sphi 0, %s65
      %s68 = sphi 0, %s67
      %s82 = sphi 0, %s68
      %s90 = sphi 0, %s92
      %s93 = sphi 0, %s90
      %s94 = sphi 0, %s93
      %s110 = sphi 0, %s94
    $region4: #{tpu_custom_call.1} parent=1 // loop_header_branch
      %20 = sbr.rel (%p18) target = $region8
    $region5: #{tpu_custom_call.1} parent=1 // loop_body
      %s22 = ssub.s32 %s17, 1
      %s23 = ssub.s32 %s17, 2
      %s30 = sadd.s32 1, %s25
      %p31 = scmp.ge.s32.totalorder %s30, 2
      %s32 = scalar_select %p31, 0, %s30
      %s33 = sadd.s32 1, %s24
      %s34 = scalar_select %p31, %s33, %s24
      %p35 = scmp.ge.s32.totalorder %s34, 2
      %s36 = scalar_select %p35, 0, %s34
      %s37 = ssub.s32 %s24, %s36
      %s38 = ssub.s32 %s25, %s32
      %s39 = sor.u32 %s37, %s38
      %p40 = scmp.eq.s32.totalorder %s39, 0
      %s42 = sadd.s32 %s41, 1
      %s43 = scalar_select %p40, %s41, %s42
      %p46 = pneg %p40
      %p47 = scmp.eq.s32.totalorder %s17, 3
      %p48 = por %p46, %p47
      %p49 = scmp.ne.s32.totalorder %s41, %s44
      %p50 = scmp.eq.s32.totalorder %s17, 0
      %p51 = por %p49, %p50
      %p52 = scmp.ne.s32.totalorder %s41, %s44
      %p53 = scmp.eq.s32.totalorder %s22, 3
      %p54 = por %p52, %p53
      %p55 = scmp.ne.s32.totalorder %s44, %s45
      %p56 = scmp.eq.s32.totalorder %s22, 0
      %p57 = por %p55, %p56
      %p58 = scmp.ne.s32.totalorder %s44, %s45
      %p59 = scmp.eq.s32.totalorder %s23, 3
      %p60 = por %p58, %p59
      %p62 = scmp.ne.s32.totalorder %s45, %s61
      %p63 = scmp.eq.s32.totalorder %s23, 0
      %p64 = por %p62, %p63
      %s66 = sadd.s32 %s65, 1
      %p69 = scmp.eq.s32.totalorder %s17, 3
      %p70 = scmp.ne.s32.totalorder %s65, %s67
      %p71 = scmp.eq.s32.totalorder %s17, 0
      %p72 = por %p70, %p71
      %p73 = scmp.ne.s32.totalorder %s65, %s67
      %p74 = scmp.eq.s32.totalorder %s22, 3
      %p75 = por %p73, %p74
      %p76 = scmp.ne.s32.totalorder %s67, %s68
      %p77 = scmp.eq.s32.totalorder %s22, 0
      %p78 = por %p76, %p77
      %p79 = scmp.ne.s32.totalorder %s67, %s68
      %p80 = scmp.eq.s32.totalorder %s23, 3
      %p81 = por %p79, %p80
      %p83 = scmp.ne.s32.totalorder %s68, %s82
      %p84 = scmp.eq.s32.totalorder %s23, 0
      %p85 = por %p83, %p84
      %s86 = ssub.s32 %s24, %s36
      %s87 = ssub.s32 %s25, %s32
      %s88 = sor.u32 %s86, %s87
      %p89 = scmp.eq.s32.totalorder %s88, 0
      %s91 = sadd.s32 %s90, 1
      %s92 = scalar_select %p89, %s90, %s91
      %p95 = pneg %p89
      %p96 = scmp.eq.s32.totalorder %s17, 3
      %p97 = por %p95, %p96
      %p98 = scmp.ne.s32.totalorder %s90, %s93
      %p99 = scmp.eq.s32.totalorder %s17, 0
      %p100 = por %p98, %p99
      %p101 = scmp.ne.s32.totalorder %s90, %s93
      %p102 = scmp.eq.s32.totalorder %s22, 3
      %p103 = por %p101, %p102
      %p104 = scmp.ne.s32.totalorder %s93, %s94
      %p105 = scmp.eq.s32.totalorder %s22, 0
      %p106 = por %p104, %p105
      %p107 = scmp.ne.s32.totalorder %s93, %s94
      %p108 = scmp.eq.s32.totalorder %s23, 3
      %p109 = por %p107, %p108
      %p111 = scmp.ne.s32.totalorder %s94, %s110
      %p112 = scmp.eq.s32.totalorder %s23, 0
      %p113 = por %p111, %p112
      %p114 = scmp.le.s32.totalorder 1, %s17
      %p115 = scmp.lt.s32.totalorder %s17, 5
      %p116 = pnand %p114, %p115
      %p117 = pneg %p116
      // Predicated region
      $region9: #{tpu_custom_call.1} parent=5 // pred_check
        _
      $region10: #{tpu_custom_call.1} parent=5 // pred_check_branch
        %119 = sbr.rel (%p116) target = $region12
      $region11: #{tpu_custom_call.1} parent=5 // pred_region
        %s120 = ssub.s32 %s17, 1
        // Predicated region
        $region13: #{tpu_custom_call.1} parent=11 // pred_check
          %p121 = pneg %p78
        $region14: #{tpu_custom_call.1} parent=11 // pred_check_branch
          %123 = sbr.rel (%p121) target = $region16
        $region15: #{tpu_custom_call.1} parent=11 // pred_region
          %s125 = ssub.s32 1024, 1024
          %126 = vsyncadd [#allocation8], %s125
          %s127 = sshll.u32 [#allocation7], 4
          %s128 = int_to_ptr.vmem [resolvable:$true] %s127
          %133 = dma.hbm_to_vmem [thread:$0]  %s2, 1024, %s128, [#allocation8], 64, 64, 4
        $region16: #{tpu_custom_call.1} parent=11 // pred_fallthru
          _
      $region12: #{tpu_custom_call.1} parent=5 // pred_fallthru
        _
      %p134 = scmp.lt.s32.totalorder %s17, 4
      // Predicated region
      $region17: #{tpu_custom_call.1} parent=5 // pred_check
        %p135 = pneg %p134
      $region18: #{tpu_custom_call.1} parent=5 // pred_check_branch
        %137 = sbr.rel (%p135) target = $region20
      $region19: #{tpu_custom_call.1} parent=5 // pred_region
        // Predicated region
        $region21: #{tpu_custom_call.1} parent=19 // pred_check
          %p138 = pneg %p51
        $region22: #{tpu_custom_call.1} parent=19 // pred_check_branch
          %140 = sbr.rel (%p138) target = $region24
        $region23: #{tpu_custom_call.1} parent=19 // pred_region
          #allocation11 [shape = 'u32[6]{0}', space=smem, size = 0x18, scoped, tag = 'DMA stride descriptor']
          %s141 = sand.u32 %s41, 1
          %s142 = scalar_lea.sflag [#allocation5], %s141
          %s143 = sand.u32 %s41, 1
          %s144 = smul.addr %s143, 128
          %s145 = scalar_lea.vmem [#allocation4], %s144
          %s147 = ssub.s32 2048, 2048
          %148 = vsyncadd %s142, %s147
          %s149 = smul.addr %s24, 32
          %s150 = sadd.s32 %s25, %s149
          %s151 = smul.addr %s150, 64
          %s152 = scalar_lea.hbm %s1, %s151
          %s154 = sshll.u32 1, 14
          %s155 = sxor.u32 4294967295, %s154
          %s157 = sld [smem:[#allocation0]]
          %s158 = sadd.s32 2, %s157
          %s160 = sshll.u32 7, 26
          %s161 = sxor.u32 4294967295, %s160
          %s162 = sand.u32 0, %s161
          %s163 = sshll.u32 %s158, 26
          %s164 = sor.u32 %s162, %s163
          %s165 = sshll.u32 %s145, 4
          %s166 = int_to_ptr.vmem [resolvable:$true] %s165
          %172 = sst [smem:[#allocation11]] 4096
          %s173 = scalar_lea.smem [#allocation11], 1
          %174 = sst [smem:[%s173]] 1024
          %s175 = scalar_lea.smem [#allocation11], 2
          %176 = sst [smem:[%s175]] 16
          %s177 = scalar_lea.smem [#allocation11], 3
          %178 = sst [smem:[%s177]] 128
          %s179 = scalar_lea.smem [#allocation11], 4
          %180 = sst [smem:[%s179]] 64
          %s181 = scalar_lea.smem [#allocation11], 5
          %182 = sst [smem:[%s181]] 4
          %184 = dma.general %s152, 2048, %s166, %s142, 131072, [#allocation11], %s164, 0
        $region24: #{tpu_custom_call.1} parent=19 // pred_fallthru
          _
      $region20: #{tpu_custom_call.1} parent=5 // pred_fallthru
        _
      %p185 = scmp.le.s32.totalorder 1, %s17
      %p186 = scmp.lt.s32.totalorder %s17, 5
      %p187 = pnand %p185, %p186
      %p188 = pneg %p187
      // Predicated region
      $region25: #{tpu_custom_call.1} parent=5 // pred_check
        _
      $region26: #{tpu_custom_call.1} parent=5 // pred_check_branch
        %190 = sbr.rel (%p187) target = $region28
      $region27: #{tpu_custom_call.1} parent=5 // pred_region
        %s191 = ssub.s32 %s17, 1
        %s192 = sand.u32 %s44, 1
        %s193 = scalar_lea.sflag [#allocation5], %s192
        %s194 = sand.u32 %s44, 1
        %s195 = smul.addr %s194, 128
        %s196 = scalar_lea.vmem [#allocation4], %s195
        // Predicated region
        $region29: #{tpu_custom_call.1} parent=27 // pred_check
          %p197 = pneg %p57
        $region30: #{tpu_custom_call.1} parent=27 // pred_check_branch
          %199 = sbr.rel (%p197) target = $region32
        $region31: #{tpu_custom_call.1} parent=27 // pred_region
          %200 = dma.done %s193, 2048
        $region32: #{tpu_custom_call.1} parent=27 // pred_fallthru
          _
        // Predicated region
        $region33: #{tpu_custom_call.1} parent=27 // pred_check
          %p201 = pneg %p78
        $region34: #{tpu_custom_call.1} parent=27 // pred_check_branch
          %203 = sbr.rel (%p201) target = $region36
        $region35: #{tpu_custom_call.1} parent=27 // pred_region
          %204 = dma.done [#allocation8], 1024
        $region36: #{tpu_custom_call.1} parent=27 // pred_fallthru
          _
        %s205 = sand.u32 %s44, 1
        %s206 = scalar_lea.sflag [#allocation5], %s205
        %s207 = sand.u32 %s44, 1
        %s208 = smul.addr %s207, 128
        %s209 = scalar_lea.vmem [#allocation4], %s208
        %p210 = pneg %p57
        %p211 = pneg %p54
        %p212 = pneg %p78
        %p213 = pneg %p75
        %p214 = pneg %p106
        %p215 = pneg %p103
        %s216 = sand.u32 %s93, 1
        %s217 = scalar_lea.sflag [#allocation6], %s216
        %s218 = sand.u32 %s93, 1
        %s219 = smul.addr %s218, 128
        %s220 = scalar_lea.vmem [#allocation9], %s219
        %s222 = sld [smem:[#allocation3]]
        %v223 = vlaneseq
        %v224 = vand.u32 %v223, 127
        %s225 = smul.u32 %s27, 128
        %v226 = vstv %s225
        %v227 = vadd.s32 %v224, %v226
        %v228 = vld [vmem:[#allocation7] sm:$0xf]
        %v229 = vld [vmem:[#allocation7 + $0x4] sm:$0xf]
        %v230 = vld [vmem:[#allocation7 + $0x8] sm:$0xf]
        %v231 = vld [vmem:[#allocation7 + $0xc] sm:$0xf]
        %v232 = vld [vmem:[#allocation7 + $0x10] sm:$0xf]
        %v233 = vld [vmem:[#allocation7 + $0x14] sm:$0xf]
        %v234 = vld [vmem:[#allocation7 + $0x18] sm:$0xf]
        %v235 = vld [vmem:[#allocation7 + $0x1c] sm:$0xf]
        %v236 = vld [vmem:[#allocation7 + $0x20] sm:$0xf]
        %v237 = vld [vmem:[#allocation7 + $0x24] sm:$0xf]
        %v238 = vld [vmem:[#allocation7 + $0x28] sm:$0xf]
        %v239 = vld [vmem:[#allocation7 + $0x2c] sm:$0xf]
        %v240 = vld [vmem:[#allocation7 + $0x30] sm:$0xf]
        %v241 = vld [vmem:[#allocation7 + $0x34] sm:$0xf]
        %v242 = vld [vmem:[#allocation7 + $0x38] sm:$0xf]
        %v243 = vld [vmem:[#allocation7 + $0x3c] sm:$0xf]
        %v244 = vld [vmem:[%s196] sm:$0xf]
        %v245 = vld [vmem:[%s196 + $0x4] sm:$0xf]
        %v246 = vld [vmem:[%s196 + $0x8] sm:$0xf]
        %v247 = vld [vmem:[%s196 + $0xc] sm:$0xf]
        %v248 = vld [vmem:[%s196 + $0x10] sm:$0xf]
        %v249 = vld [vmem:[%s196 + $0x14] sm:$0xf]
        %v250 = vld [vmem:[%s196 + $0x18] sm:$0xf]
        %v251 = vld [vmem:[%s196 + $0x1c] sm:$0xf]
        %v252 = vld [vmem:[%s196 + $0x20] sm:$0xf]
        %v253 = vld [vmem:[%s196 + $0x24] sm:$0xf]
        %v254 = vld [vmem:[%s196 + $0x28] sm:$0xf]
        %v255 = vld [vmem:[%s196 + $0x2c] sm:$0xf]
        %v256 = vld [vmem:[%s196 + $0x30] sm:$0xf]
        %v257 = vld [vmem:[%s196 + $0x34] sm:$0xf]
        %v258 = vld [vmem:[%s196 + $0x38] sm:$0xf]
        %v259 = vld [vmem:[%s196 + $0x3c] sm:$0xf]
        %s260 = scalar_lea.vmem %s196, 64 [#allocation4]
        %v261 = vld [vmem:[%s260] sm:$0xf]
        %v262 = vld [vmem:[%s260 + $0x4] sm:$0xf]
        %v263 = vld [vmem:[%s260 + $0x8] sm:$0xf]
        %v264 = vld [vmem:[%s260 + $0xc] sm:$0xf]
        %v265 = vld [vmem:[%s260 + $0x10] sm:$0xf]
        %v266 = vld [vmem:[%s260 + $0x14] sm:$0xf]
        %v267 = vld [vmem:[%s260 + $0x18] sm:$0xf]
        %v268 = vld [vmem:[%s260 + $0x1c] sm:$0xf]
        %v269 = vld [vmem:[%s260 + $0x20] sm:$0xf]
        %v270 = vld [vmem:[%s260 + $0x24] sm:$0xf]
        %v271 = vld [vmem:[%s260 + $0x28] sm:$0xf]
        %v272 = vld [vmem:[%s260 + $0x2c] sm:$0xf]
        %v273 = vld [vmem:[%s260 + $0x30] sm:$0xf]
        %v274 = vld [vmem:[%s260 + $0x34] sm:$0xf]
        %v275 = vld [vmem:[%s260 + $0x38] sm:$0xf]
        %v276 = vld [vmem:[%s260 + $0x3c] sm:$0xf]
        %v293 = vunpack.c.l.b16 %v244
        %v294 = vunpack.c.l.b16 %v245
        %v295 = vunpack.c.l.b16 %v246
        %v296 = vunpack.c.l.b16 %v247
        %v297 = vunpack.c.l.b16 %v248
        %v298 = vunpack.c.l.b16 %v249
        %v299 = vunpack.c.l.b16 %v250
        %v300 = vunpack.c.l.b16 %v251
        %v301 = vunpack.c.l.b16 %v252
        %v302 = vunpack.c.l.b16 %v253
        %v303 = vunpack.c.l.b16 %v254
        %v304 = vunpack.c.l.b16 %v255
        %v305 = vunpack.c.l.b16 %v256
        %v306 = vunpack.c.l.b16 %v257
        %v307 = vunpack.c.l.b16 %v258
        %v308 = vunpack.c.l.b16 %v259
        %v309 = vpack.c.b16 %v294, %v293
        %v310 = vpack.c.b16 %v296, %v295
        %v311 = vpack.c.b16 %v298, %v297
        %v312 = vpack.c.b16 %v300, %v299
        %v313 = vpack.c.b16 %v302, %v301
        %v314 = vpack.c.b16 %v304, %v303
        %v315 = vpack.c.b16 %v306, %v305
        %v316 = vpack.c.b16 %v308, %v307
        %v341 = vunpack.c.l.b16 %v261
        %v342 = vunpack.c.l.b16 %v262
        %v343 = vunpack.c.l.b16 %v263
        %v344 = vunpack.c.l.b16 %v264
        %v345 = vunpack.c.l.b16 %v265
        %v346 = vunpack.c.l.b16 %v266
        %v347 = vunpack.c.l.b16 %v267
        %v348 = vunpack.c.l.b16 %v268
        %v349 = vunpack.c.l.b16 %v269
        %v350 = vunpack.c.l.b16 %v270
        %v351 = vunpack.c.l.b16 %v271
        %v352 = vunpack.c.l.b16 %v272
        %v353 = vunpack.c.l.b16 %v273
        %v354 = vunpack.c.l.b16 %v274
        %v355 = vunpack.c.l.b16 %v275
        %v356 = vunpack.c.l.b16 %v276
        %v357 = vpack.c.b16 %v342, %v341
        %v358 = vpack.c.b16 %v344, %v343
        %v359 = vpack.c.b16 %v346, %v345
        %v360 = vpack.c.b16 %v348, %v347
        %v361 = vpack.c.b16 %v350, %v349
        %v362 = vpack.c.b16 %v352, %v351
        %v363 = vpack.c.b16 %v354, %v353
        %v364 = vpack.c.b16 %v356, %v355
        %v389 = vunpack.c.l.b16 %v228
        %v390 = vunpack.c.l.b16 %v229
        %v391 = vunpack.c.l.b16 %v230
        %v392 = vunpack.c.l.b16 %v231
        %v393 = vunpack.c.l.b16 %v232
        %v394 = vunpack.c.l.b16 %v233
        %v395 = vunpack.c.l.b16 %v234
        %v396 = vunpack.c.l.b16 %v235
        %v397 = vunpack.c.l.b16 %v236
        %v398 = vunpack.c.l.b16 %v237
        %v399 = vunpack.c.l.b16 %v238
        %v400 = vunpack.c.l.b16 %v239
        %v401 = vunpack.c.l.b16 %v240
        %v402 = vunpack.c.l.b16 %v241
        %v403 = vunpack.c.l.b16 %v242
        %v404 = vunpack.c.l.b16 %v243
        %v405 = vpack.c.b16 %v390, %v389
        %v406 = vpack.c.b16 %v392, %v391
        %v407 = vpack.c.b16 %v394, %v393
        %v408 = vpack.c.b16 %v396, %v395
        %v409 = vpack.c.b16 %v398, %v397
        %v410 = vpack.c.b16 %v400, %v399
        %v411 = vpack.c.b16 %v402, %v401
        %v412 = vpack.c.b16 %v404, %v403
        %421 = vmatprep.subr.bf16.mxu0 %v364
        %422 = vmatpush1.bf16.msra.mxu0 %v316
        %423 = vmatprep.subr.bf16.mxu0 %v363
        %424 = vmatpush1.bf16.msra.mxu0 %v315
        %425 = vmatprep.subr.bf16.mxu0 %v362
        %426 = vmatpush1.bf16.msra.mxu0 %v314
        %427 = vmatprep.subr.bf16.mxu0 %v361
        %428 = vmatpush1.bf16.msra.mxu0 %v313
        %429 = vmatprep.subr.bf16.mxu0 %v360
        %430 = vmatpush1.bf16.msra.mxu0 %v312
        %431 = vmatprep.subr.bf16.mxu0 %v359
        %432 = vmatpush1.bf16.msra.mxu0 %v311
        %433 = vmatprep.subr.bf16.mxu0 %v358
        %434 = vmatpush1.bf16.msra.mxu0 %v310
        %435 = vmatprep.subr.bf16.mxu0 %v357
        %436 = vmatpush1.bf16.msra.mxu0 %v309
        %437 = vmatprep.subr.bf16.mxu0 0
        %438 = vmatpush2.bf16.msra.mxu0 0
        %439 = vmatprep.subr.bf16.mxu0 0
        %440 = vmatpush2.bf16.msra.mxu0 0
        %441 = vmatprep.subr.bf16.mxu0 0
        %442 = vmatpush2.bf16.msra.mxu0 0
        %443 = vmatprep.subr.bf16.mxu0 0
        %444 = vmatpush2.bf16.msra.mxu0 0
        %445 = vmatprep.subr.bf16.mxu0 0
        %446 = vmatpush2.bf16.msra.mxu0 0
        %447 = vmatprep.subr.bf16.mxu0 0
        %448 = vmatpush2.bf16.msra.mxu0 0
        %449 = vmatprep.subr.bf16.mxu0 0
        %450 = vmatpush2.bf16.msra.mxu0 0
        %451 = vmatprep.subr.bf16.mxu0 0
        %452 = vmatpush2.bf16.msra.mxu0 0
        %453 = vmatprep.mubr.bf16.mxu0 0
        %454 = vmatmul.mubr.bf16.gmra.mxu0 %v405
        %v455 = vpop.f32.mrf.mxu0
        %v456 = vadd.f32 0.0, %v455
        %v457 = vpop.f32.mrf.mxu0
        %v458 = vadd.f32 0.0, %v457
        %v459 = vpop.f32.mrf.mxu0
        %v460 = vadd.f32 0.0, %v459
        %v461 = vpop.f32.mrf.mxu0
        %v462 = vadd.f32 0.0, %v461
        %463 = vmatprep.mubr.bf16.mxu0 0
        %464 = vmatmul.mubr.bf16.gmra.mxu0 %v406
        %v465 = vpop.f32.mrf.mxu0
        %v466 = vadd.f32 0.0, %v465
        %v467 = vpop.f32.mrf.mxu0
        %v468 = vadd.f32 0.0, %v467
        %v469 = vpop.f32.mrf.mxu0
        %v470 = vadd.f32 0.0, %v469
        %v471 = vpop.f32.mrf.mxu0
        %v472 = vadd.f32 0.0, %v471
        %473 = vmatprep.mubr.bf16.mxu0 0
        %474 = vmatmul.mubr.bf16.gmra.mxu0 %v407
        %v475 = vpop.f32.mrf.mxu0
        %v476 = vadd.f32 0.0, %v475
        %v477 = vpop.f32.mrf.mxu0
        %v478 = vadd.f32 0.0, %v477
        %v479 = vpop.f32.mrf.mxu0
        %v480 = vadd.f32 0.0, %v479
        %v481 = vpop.f32.mrf.mxu0
        %v482 = vadd.f32 0.0, %v481
        %483 = vmatprep.mubr.bf16.mxu0 0
        %484 = vmatmul.mubr.bf16.gmra.mxu0 %v408
        %v485 = vpop.f32.mrf.mxu0
        %v486 = vadd.f32 0.0, %v485
        %v487 = vpop.f32.mrf.mxu0
        %v488 = vadd.f32 0.0, %v487
        %v489 = vpop.f32.mrf.mxu0
        %v490 = vadd.f32 0.0, %v489
        %v491 = vpop.f32.mrf.mxu0
        %v492 = vadd.f32 0.0, %v491
        %493 = vmatprep.mubr.bf16.mxu0 0
        %494 = vmatmul.mubr.bf16.gmra.mxu0 %v409
        %v495 = vpop.f32.mrf.mxu0
        %v496 = vadd.f32 0.0, %v495
        %v497 = vpop.f32.mrf.mxu0
        %v498 = vadd.f32 0.0, %v497
        %v499 = vpop.f32.mrf.mxu0
        %v500 = vadd.f32 0.0, %v499
        %v501 = vpop.f32.mrf.mxu0
        %v502 = vadd.f32 0.0, %v501
        %503 = vmatprep.mubr.bf16.mxu0 0
        %504 = vmatmul.mubr.bf16.gmra.mxu0 %v410
        %v505 = vpop.f32.mrf.mxu0
        %v506 = vadd.f32 0.0, %v505
        %v507 = vpop.f32.mrf.mxu0
        %v508 = vadd.f32 0.0, %v507
        %v509 = vpop.f32.mrf.mxu0
        %v510 = vadd.f32 0.0, %v509
        %v511 = vpop.f32.mrf.mxu0
        %v512 = vadd.f32 0.0, %v511
        %513 = vmatprep.mubr.bf16.mxu0 0
        %514 = vmatmul.mubr.bf16.gmra.mxu0 %v411
        %v515 = vpop.f32.mrf.mxu0
        %v516 = vadd.f32 0.0, %v515
        %v517 = vpop.f32.mrf.mxu0
        %v518 = vadd.f32 0.0, %v517
        %v519 = vpop.f32.mrf.mxu0
        %v520 = vadd.f32 0.0, %v519
        %v521 = vpop.f32.mrf.mxu0
        %v522 = vadd.f32 0.0, %v521
        %523 = vmatprep.mubr.bf16.mxu0 0
        %524 = vmatmul.mubr.bf16.gmra.mxu0 %v412
        %v525 = vpop.f32.mrf.mxu0
        %v526 = vadd.f32 0.0, %v525
        %v527 = vpop.f32.mrf.mxu0
        %v528 = vadd.f32 0.0, %v527
        %v529 = vpop.f32.mrf.mxu0
        %v530 = vadd.f32 0.0, %v529
        %v531 = vpop.f32.mrf.mxu0
        %v532 = vadd.f32 0.0, %v531
        %533 = vdwg.mxu0
        %v534 = vmul.u32 %v227, 2
        %v535 = vstv %s222
        %vm536 = vcmp.ge.s32.totalorder %v534, %v535
        %v537 = vsel %vm536, 1, 0
        %vm538 = vcmp.eq.s32.totalorder %v537, 1
        %v539 = vsel %vm538, -3.4028235e+38, %v456
        %v540 = vsel %vm538, -3.4028235e+38, %v460
        %v541 = vsel %vm538, -3.4028235e+38, %v466
        %v542 = vsel %vm538, -3.4028235e+38, %v470
        %v543 = vsel %vm538, -3.4028235e+38, %v476
        %v544 = vsel %vm538, -3.4028235e+38, %v480
        %v545 = vsel %vm538, -3.4028235e+38, %v486
        %v546 = vsel %vm538, -3.4028235e+38, %v490
        %v547 = vsel %vm538, -3.4028235e+38, %v496
        %v548 = vsel %vm538, -3.4028235e+38, %v500
        %v549 = vsel %vm538, -3.4028235e+38, %v506
        %v550 = vsel %vm538, -3.4028235e+38, %v510
        %v551 = vsel %vm538, -3.4028235e+38, %v516
        %v552 = vsel %vm538, -3.4028235e+38, %v520
        %v553 = vsel %vm538, -3.4028235e+38, %v526
        %v554 = vsel %vm538, -3.4028235e+38, %v530
        %v555 = vadd.s32 %v534, 1
        %vm556 = vcmp.ge.s32.totalorder %v555, %v535
        %v557 = vsel %vm556, 1, 0
        %vm558 = vcmp.eq.s32.totalorder %v557, 1
        %v559 = vsel %vm558, -3.4028235e+38, %v458
        %v560 = vsel %vm558, -3.4028235e+38, %v462
        %v561 = vsel %vm558, -3.4028235e+38, %v468
        %v562 = vsel %vm558, -3.4028235e+38, %v472
        %v563 = vsel %vm558, -3.4028235e+38, %v478
        %v564 = vsel %vm558, -3.4028235e+38, %v482
        %v565 = vsel %vm558, -3.4028235e+38, %v488
        %v566 = vsel %vm558, -3.4028235e+38, %v492
        %v567 = vsel %vm558, -3.4028235e+38, %v498
        %v568 = vsel %vm558, -3.4028235e+38, %v502
        %v569 = vsel %vm558, -3.4028235e+38, %v508
        %v570 = vsel %vm558, -3.4028235e+38, %v512
        %v571 = vsel %vm558, -3.4028235e+38, %v518
        %v572 = vsel %vm558, -3.4028235e+38, %v522
        %v573 = vsel %vm558, -3.4028235e+38, %v528
        %v574 = vsel %vm558, -3.4028235e+38, %v532
        %v575 = vsub.f32 %v559, %v539
        %v576 = vsub.f32 %v560, %v540
        %v577 = vsub.f32 %v561, %v541
        %v578 = vsub.f32 %v562, %v542
        %v579 = vsub.f32 %v563, %v543
        %v580 = vsub.f32 %v564, %v544
        %v581 = vsub.f32 %v565, %v545
        %v582 = vsub.f32 %v566, %v546
        %v583 = vsub.f32 %v567, %v547
        %v584 = vsub.f32 %v568, %v548
        %v585 = vsub.f32 %v569, %v549
        %v586 = vsub.f32 %v570, %v550
        %v587 = vsub.f32 %v571, %v551
        %v588 = vsub.f32 %v572, %v552
        %v589 = vsub.f32 %v573, %v553
        %v590 = vsub.f32 %v574, %v554
        %v591 = vmin.f32 %v575, 80.0
        %v592 = vmin.f32 %v576, 80.0
        %v593 = vmin.f32 %v577, 80.0
        %v594 = vmin.f32 %v578, 80.0
        %v595 = vmin.f32 %v579, 80.0
        %v596 = vmin.f32 %v580, 80.0
        %v597 = vmin.f32 %v581, 80.0
        %v598 = vmin.f32 %v582, 80.0
        %v599 = vmin.f32 %v583, 80.0
        %v600 = vmin.f32 %v584, 80.0
        %v601 = vmin.f32 %v585, 80.0
        %v602 = vmin.f32 %v586, 80.0
        %v603 = vmin.f32 %v587, 80.0
        %v604 = vmin.f32 %v588, 80.0
        %v605 = vmin.f32 %v589, 80.0
        %v606 = vmin.f32 %v590, 80.0
        %v607 = vmul.f32 %v591, 1.442695
        %v608 = vpow.pop %v607
        %v609 = vmul.f32 %v592, 1.442695
        %v610 = vpow.pop %v609
        %v611 = vmul.f32 %v593, 1.442695
        %v612 = vpow.pop %v611
        %v613 = vmul.f32 %v594, 1.442695
        %v614 = vpow.pop %v613
        %v615 = vmul.f32 %v595, 1.442695
        %v616 = vpow.pop %v615
        %v617 = vmul.f32 %v596, 1.442695
        %v618 = vpow.pop %v617
        %v619 = vmul.f32 %v597, 1.442695
        %v620 = vpow.pop %v619
        %v621 = vmul.f32 %v598, 1.442695
        %v622 = vpow.pop %v621
        %v623 = vmul.f32 %v599, 1.442695
        %v624 = vpow.pop %v623
        %v625 = vmul.f32 %v600, 1.442695
        %v626 = vpow.pop %v625
        %v627 = vmul.f32 %v601, 1.442695
        %v628 = vpow.pop %v627
        %v629 = vmul.f32 %v602, 1.442695
        %v630 = vpow.pop %v629
        %v631 = vmul.f32 %v603, 1.442695
        %v632 = vpow.pop %v631
        %v633 = vmul.f32 %v604, 1.442695
        %v634 = vpow.pop %v633
        %v635 = vmul.f32 %v605, 1.442695
        %v636 = vpow.pop %v635
        %v637 = vmul.f32 %v606, 1.442695
        %v638 = vpow.pop %v637
        %v639 = vadd.f32 %v608, 1.0
        %v640 = vadd.f32 %v610, 1.0
        %v641 = vadd.f32 %v612, 1.0
        %v642 = vadd.f32 %v614, 1.0
        %v643 = vadd.f32 %v616, 1.0
        %v644 = vadd.f32 %v618, 1.0
        %v645 = vadd.f32 %v620, 1.0
        %v646 = vadd.f32 %v622, 1.0
        %v647 = vadd.f32 %v624, 1.0
        %v648 = vadd.f32 %v626, 1.0
        %v649 = vadd.f32 %v628, 1.0
        %v650 = vadd.f32 %v630, 1.0
        %v651 = vadd.f32 %v632, 1.0
        %v652 = vadd.f32 %v634, 1.0
        %v653 = vadd.f32 %v636, 1.0
        %v654 = vadd.f32 %v638, 1.0
        %v655 = vrcp.pop %v639
        %v656 = vrcp.pop %v640
        %v657 = vrcp.pop %v641
        %v658 = vrcp.pop %v642
        %v659 = vrcp.pop %v643
        %v660 = vrcp.pop %v644
        %v661 = vrcp.pop %v645
        %v662 = vrcp.pop %v646
        %v663 = vrcp.pop %v647
        %v664 = vrcp.pop %v648
        %v665 = vrcp.pop %v649
        %v666 = vrcp.pop %v650
        %v667 = vrcp.pop %v651
        %v668 = vrcp.pop %v652
        %v669 = vrcp.pop %v653
        %v670 = vrcp.pop %v654
        %v671 = vunpack.c.l.bf16 %v244
        %v672 = vunpack.c.l.bf16 %v245
        %v673 = vunpack.c.l.bf16 %v246
        %v674 = vunpack.c.l.bf16 %v247
        %v675 = vunpack.c.l.bf16 %v248
        %v676 = vunpack.c.l.bf16 %v249
        %v677 = vunpack.c.l.bf16 %v250
        %v678 = vunpack.c.l.bf16 %v251
        %v679 = vunpack.c.l.bf16 %v252
        %v680 = vunpack.c.l.bf16 %v253
        %v681 = vunpack.c.l.bf16 %v254
        %v682 = vunpack.c.l.bf16 %v255
        %v683 = vunpack.c.l.bf16 %v256
        %v684 = vunpack.c.l.bf16 %v257
        %v685 = vunpack.c.l.bf16 %v258
        %v686 = vunpack.c.l.bf16 %v259
        %v687 = vmul.f32 %v671, %v655
        %v688 = vmul.f32 %v672, %v656
        %v689 = vmul.f32 %v673, %v657
        %v690 = vmul.f32 %v674, %v658
        %v691 = vmul.f32 %v675, %v659
        %v692 = vmul.f32 %v676, %v660
        %v693 = vmul.f32 %v677, %v661
        %v694 = vmul.f32 %v678, %v662
        %v695 = vmul.f32 %v679, %v663
        %v696 = vmul.f32 %v680, %v664
        %v697 = vmul.f32 %v681, %v665
        %v698 = vmul.f32 %v682, %v666
        %v699 = vmul.f32 %v683, %v667
        %v700 = vmul.f32 %v684, %v668
        %v701 = vmul.f32 %v685, %v669
        %v702 = vmul.f32 %v686, %v670
        %v703 = vunpack.c.l.bf16 %v261
        %v704 = vunpack.c.l.bf16 %v262
        %v705 = vunpack.c.l.bf16 %v263
        %v706 = vunpack.c.l.bf16 %v264
        %v707 = vunpack.c.l.bf16 %v265
        %v708 = vunpack.c.l.bf16 %v266
        %v709 = vunpack.c.l.bf16 %v267
        %v710 = vunpack.c.l.bf16 %v268
        %v711 = vunpack.c.l.bf16 %v269
        %v712 = vunpack.c.l.bf16 %v270
        %v713 = vunpack.c.l.bf16 %v271
        %v714 = vunpack.c.l.bf16 %v272
        %v715 = vunpack.c.l.bf16 %v273
        %v716 = vunpack.c.l.bf16 %v274
        %v717 = vunpack.c.l.bf16 %v275
        %v718 = vunpack.c.l.bf16 %v276
        %v719 = vsub.f32 1.0, %v655
        %v720 = vsub.f32 1.0, %v656
        %v721 = vsub.f32 1.0, %v657
        %v722 = vsub.f32 1.0, %v658
        %v723 = vsub.f32 1.0, %v659
        %v724 = vsub.f32 1.0, %v660
        %v725 = vsub.f32 1.0, %v661
        %v726 = vsub.f32 1.0, %v662
        %v727 = vsub.f32 1.0, %v663
        %v728 = vsub.f32 1.0, %v664
        %v729 = vsub.f32 1.0, %v665
        %v730 = vsub.f32 1.0, %v666
        %v731 = vsub.f32 1.0, %v667
        %v732 = vsub.f32 1.0, %v668
        %v733 = vsub.f32 1.0, %v669
        %v734 = vsub.f32 1.0, %v670
        %v735 = vmul.f32 %v703, %v719
        %v736 = vmul.f32 %v704, %v720
        %v737 = vmul.f32 %v705, %v721
        %v738 = vmul.f32 %v706, %v722
        %v739 = vmul.f32 %v707, %v723
        %v740 = vmul.f32 %v708, %v724
        %v741 = vmul.f32 %v709, %v725
        %v742 = vmul.f32 %v710, %v726
        %v743 = vmul.f32 %v711, %v727
        %v744 = vmul.f32 %v712, %v728
        %v745 = vmul.f32 %v713, %v729
        %v746 = vmul.f32 %v714, %v730
        %v747 = vmul.f32 %v715, %v731
        %v748 = vmul.f32 %v716, %v732
        %v749 = vmul.f32 %v717, %v733
        %v750 = vmul.f32 %v718, %v734
        %v751 = vadd.f32 %v687, %v735
        %v752 = vadd.f32 %v688, %v736
        %v753 = vadd.f32 %v689, %v737
        %v754 = vadd.f32 %v690, %v738
        %v755 = vadd.f32 %v691, %v739
        %v756 = vadd.f32 %v692, %v740
        %v757 = vadd.f32 %v693, %v741
        %v758 = vadd.f32 %v694, %v742
        %v759 = vadd.f32 %v695, %v743
        %v760 = vadd.f32 %v696, %v744
        %v761 = vadd.f32 %v697, %v745
        %v762 = vadd.f32 %v698, %v746
        %v763 = vadd.f32 %v699, %v747
        %v764 = vadd.f32 %v700, %v748
        %v765 = vadd.f32 %v701, %v749
        %v766 = vadd.f32 %v702, %v750
        %767 = vst [vmem:[%s220] sm:$0xff] %v751
        %768 = vst [vmem:[%s220 + $0x8] sm:$0xff] %v752
        %769 = vst [vmem:[%s220 + $0x10] sm:$0xff] %v753
        %770 = vst [vmem:[%s220 + $0x18] sm:$0xff] %v754
        %771 = vst [vmem:[%s220 + $0x20] sm:$0xff] %v755
        %772 = vst [vmem:[%s220 + $0x28] sm:$0xff] %v756
        %773 = vst [vmem:[%s220 + $0x30] sm:$0xff] %v757
        %774 = vst [vmem:[%s220 + $0x38] sm:$0xff] %v758
        %775 = vst [vmem:[%s220 + $0x40] sm:$0xff] %v759
        %776 = vst [vmem:[%s220 + $0x48] sm:$0xff] %v760
        %777 = vst [vmem:[%s220 + $0x50] sm:$0xff] %v761
        %778 = vst [vmem:[%s220 + $0x58] sm:$0xff] %v762
        %779 = vst [vmem:[%s220 + $0x60] sm:$0xff] %v763
        %780 = vst [vmem:[%s220 + $0x68] sm:$0xff] %v764
        %781 = vst [vmem:[%s220 + $0x70] sm:$0xff] %v765
        %782 = vst [vmem:[%s220 + $0x78] sm:$0xff] %v766
        %s783 = sand.u32 %s93, 1
        %s784 = scalar_lea.sflag [#allocation6], %s783
        %s785 = sand.u32 %s93, 1
        %s786 = smul.addr %s785, 128
        %s787 = scalar_lea.vmem [#allocation9], %s786
        // Predicated region
        $region37: #{tpu_custom_call.1} parent=27 // pred_check
          %p788 = pneg %p103
        $region38: #{tpu_custom_call.1} parent=27 // pred_check_branch
          %790 = sbr.rel (%p788) target = $region40
        $region39: #{tpu_custom_call.1} parent=27 // pred_region
          %s792 = ssub.s32 2048, 2048
          %793 = vsyncadd %s784, %s792
          %s794 = smul.addr %s26, 32
          %s795 = sadd.s32 %s27, %s794
          %s796 = smul.addr %s795, 128
          %s797 = scalar_lea.hbm %s3, %s796
          %s798 = sshll.u32 %s787, 4
          %s799 = int_to_ptr.vmem [resolvable:$true] %s798
          %804 = dma.vmem_to_hbm [thread:$0]  %s799, 2048, %s797, %s784, 128, 256, 8
        $region40: #{tpu_custom_call.1} parent=27 // pred_fallthru
          _
      $region28: #{tpu_custom_call.1} parent=5 // pred_fallthru
        _
      %p805 = scmp.le.s32.totalorder 2, %s17
      // Predicated region
      $region41: #{tpu_custom_call.1} parent=5 // pred_check
        %p806 = pneg %p805
      $region42: #{tpu_custom_call.1} parent=5 // pred_check_branch
        %808 = sbr.rel (%p806) target = $region44
      $region43: #{tpu_custom_call.1} parent=5 // pred_region
        %s809 = ssub.s32 %s17, 2
        // Predicated region
        $region45: #{tpu_custom_call.1} parent=43 // pred_check
          %p810 = pneg %p109
        $region46: #{tpu_custom_call.1} parent=43 // pred_check_branch
          %812 = sbr.rel (%p810) target = $region48
        $region47: #{tpu_custom_call.1} parent=43 // pred_region
          %s813 = sand.u32 %s94, 1
          %s814 = scalar_lea.sflag [#allocation6], %s813
          %s815 = sand.u32 %s94, 1
          %s816 = smul.addr %s815, 128
          %s817 = scalar_lea.vmem [#allocation9], %s816
          %818 = dma.done %s814, 2048
        $region48: #{tpu_custom_call.1} parent=43 // pred_fallthru
          _
      $region44: #{tpu_custom_call.1} parent=5 // pred_fallthru
        _
    $region6: #{tpu_custom_call.1} parent=1 // loop_footer
      %s21 = sadd.s32 1, %s17
    $region7: #{tpu_custom_call.1} parent=1 // loop_footer_branch
      %16 = sbr.rel target = $region3
    $region8: #{tpu_custom_call.1} parent=1 // loop_exit
      _
    %819 = vsyncpa [#allocation5], 1
    %s820 = scalar_lea.sflag [#allocation5], 1
    %821 = vsyncpa %s820, 1
    %822 = vsyncpa [#allocation8], 1
    %823 = vsyncpa [#allocation6], 1
    %s824 = scalar_lea.sflag [#allocation6], 1
    %825 = vsyncpa %s824, 1

// kernel: tpu_custom_call.1
$region0: #{tpu_custom_call.1}
  #allocation0 [shape = 'u32[]', space=smem, size = 0x4, offset = 0x4, fixed_abs, tag = 'smem constant byte address 0x4 - core index']
  #allocation1 [shape = 'u32[144,128]{1,0:T(1,128)}', space=vmem, size = 0x12000, scoped, tag = 'internal scratch']
  #allocation2 [shape = 's32[1]{0}', space=sflag, size = 0x4, scoped, tag = 'scoped memory for tpu_custom_call.1']
  #allocation3 [shape = 's32[1]{0:T(128)S(6)}', space=smem, size = 0x200, scoped, tag = 'prefetched SMEM operand 0']
  #allocation10 [shape = 's32[]', space=sflag, size = 0x4, offset = 0, fixed_abs, tag = 'sflag constant byte address 0x0 - dummy sync flag']
  %s0 = inlined_call_operand.<no memory space> [shape: s32[1], index: 0, kind: input, shape index: {}]
  %s1 = inlined_call_operand.hbm [shape: bf16[2,2,128,256], index: 1, kind: input, shape index: {}]
  %s2 = inlined_call_operand.hbm [shape: bf16[128,128], index: 2, kind: input, shape index: {}]
  %s3 = inlined_call_operand.hbm [shape: f32[2,128,256], index: 3, kind: output, shape index: {}]
  %s4 = sld [smem:[#allocation0]]
  $region49: #{tpu_custom_call.1} parent=0
    _
  %s6 = ssub.s32 1, %s4
  %s7 = scalar_select 0, %s6, %s4
  %8 = sst [smem:[#allocation3]] %s0
  $region1: #{tpu_custom_call.1} parent=0
    #allocation4 [shape = 'u8[131072]{0}', space=vmem, size = 0x20000, scoped, tag = 'input window, operand 1']
    #allocation5 [shape = 's32[2]{0}', space=sflag, size = 0x8, scoped, tag = 'scoped memory for tpu_custom_call.1']
    #allocation6 [shape = 's32[2]{0}', space=sflag, size = 0x8, scoped, tag = 'scoped memory for tpu_custom_call.1']
    #allocation7 [shape = 'u8[32768]{0}', space=vmem, size = 0x8000, scoped, tag = 'input window, operand 2, single buffered']
    #allocation8 [shape = 's32[1]{0}', space=sflag, size = 0x4, scoped, tag = 'scoped memory for tpu_custom_call.1']
    #allocation9 [shape = 'u8[131072]{0}', space=vmem, size = 0x20000, scoped, tag = 'output window, operand 0']
    %9 = vsyncpa [#allocation5], 0
    %s10 = scalar_lea.sflag [#allocation5], 1
    %11 = vsyncpa %s10, 0
    %12 = vsyncpa [#allocation8], 0
    %13 = vsyncpa [#allocation6], 0
    %s14 = scalar_lea.sflag [#allocation6], 1
    %15 = vsyncpa %s14, 0
    loop: start=0, step=1, limit=6
    $region2: #{tpu_custom_call.1} parent=1 // loop_pre_header
      _
    $region3: #{tpu_custom_call.1} parent=1 // loop_header
      %s17 = sphi 0, %s21
      %p18 = scmp.ge.s32.totalorder %s17, 6
      %s24 = sphi 0, %s36
      %s25 = sphi 0, %s32
      %s26 = sphi 0, %s24
      %s27 = sphi 0, %s25
      %s28 = sphi 0, %s26
      %s29 = sphi 0, %s27
      %s41 = sphi 0, %s43
      %s44 = sphi 0, %s41
      %s45 = sphi 0, %s44
      %s61 = sphi 0, %s45
      %s65 = sphi 0, %s65
      %s67 = sphi 0, %s65
      %s68 = sphi 0, %s67
      %s82 = sphi 0, %s68
      %s90 = sphi 0, %s92
      %s93 = sphi 0, %s90
      %s94 = sphi 0, %s93
      %s110 = sphi 0, %s94
    $region4: #{tpu_custom_call.1} parent=1 // loop_header_branch
      %20 = sbr.rel (%p18) target = $region8
    $region5: #{tpu_custom_call.1} parent=1 // loop_body
      %s22 = ssub.s32 %s17, 1
      %s23 = ssub.s32 %s17, 2
      %s30 = sadd.s32 1, %s25
      %p31 = scmp.ge.s32.totalorder %s30, 2
      %s32 = scalar_select %p31, 0, %s30
      %s33 = sadd.s32 1, %s24
      %s34 = scalar_select %p31, %s33, %s24
      %p35 = scmp.ge.s32.totalorder %s34, 2
      %s36 = scalar_select %p35, 0, %s34
      %s37 = ssub.s32 %s24, %s36
      %s38 = ssub.s32 %s25, %s32
      %s39 = sor.u32 %s37, %s38
      %p40 = scmp.eq.s32.totalorder %s39, 0
      %s42 = sadd.s32 %s41, 1
      %s43 = scalar_select %p40, %s41, %s42
      %p46 = pneg %p40
      %p47 = scmp.eq.s32.totalorder %s17, 3
      %p48 = por %p46, %p47
      %p49 = scmp.ne.s32.totalorder %s41, %s44
      %p50 = scmp.eq.s32.totalorder %s17, 0
      %p51 = por %p49, %p50
      %p52 = scmp.ne.s32.totalorder %s41, %s44
      %p53 = scmp.eq.s32.totalorder %s22, 3
      %p54 = por %p52, %p53
      %p55 = scmp.ne.s32.totalorder %s44, %s45
      %p56 = scmp.eq.s32.totalorder %s22, 0
      %p57 = por %p55, %p56
      %p58 = scmp.ne.s32.totalorder %s44, %s45
      %p59 = scmp.eq.s32.totalorder %s23, 3
      %p60 = por %p58, %p59
      %p62 = scmp.ne.s32.totalorder %s45, %s61
      %p63 = scmp.eq.s32.totalorder %s23, 0
      %p64 = por %p62, %p63
      %s66 = sadd.s32 %s65, 1
      %p69 = scmp.eq.s32.totalorder %s17, 3
      %p70 = scmp.ne.s32.totalorder %s65, %s67
      %p71 = scmp.eq.s32.totalorder %s17, 0
      %p72 = por %p70, %p71
      %p73 = scmp.ne.s32.totalorder %s65, %s67
      %p74 = scmp.eq.s32.totalorder %s22, 3
      %p75 = por %p73, %p74
      %p76 = scmp.ne.s32.totalorder %s67, %s68
      %p77 = scmp.eq.s32.totalorder %s22, 0
      %p78 = por %p76, %p77
      %p79 = scmp.ne.s32.totalorder %s67, %s68
      %p80 = scmp.eq.s32.totalorder %s23, 3
      %p81 = por %p79, %p80
      %p83 = scmp.ne.s32.totalorder %s68, %s82
      %p84 = scmp.eq.s32.totalorder %s23, 0
      %p85 = por %p83, %p84
      %s86 = ssub.s32 %s24, %s36
      %s87 = ssub.s32 %s25, %s32
      %s88 = sor.u32 %s86, %s87
      %p89 = scmp.eq.s32.totalorder %s88, 0
      %s91 = sadd.s32 %s90, 1
      %s92 = scalar_select %p89, %s90, %s91
      %p95 = pneg %p89
      %p96 = scmp.eq.s32.totalorder %s17, 3
      %p97 = por %p95, %p96
      %p98 = scmp.ne.s32.totalorder %s90, %s93
      %p99 = scmp.eq.s32.totalorder %s17, 0
      %p100 = por %p98, %p99
      %p101 = scmp.ne.s32.totalorder %s90, %s93
      %p102 = scmp.eq.s32.totalorder %s22, 3
      %p103 = por %p101, %p102
      %p104 = scmp.ne.s32.totalorder %s93, %s94
      %p105 = scmp.eq.s32.totalorder %s22, 0
      %p106 = por %p104, %p105
      %p107 = scmp.ne.s32.totalorder %s93, %s94
      %p108 = scmp.eq.s32.totalorder %s23, 3
      %p109 = por %p107, %p108
      %p111 = scmp.ne.s32.totalorder %s94, %s110
      %p112 = scmp.eq.s32.totalorder %s23, 0
      %p113 = por %p111, %p112
      %p114 = scmp.le.s32.totalorder 1, %s17
      %p115 = scmp.lt.s32.totalorder %s17, 5
      %p116 = pnand %p114, %p115
      %p117 = pneg %p116
      // Predicated region
      $region9: #{tpu_custom_call.1} parent=5 // pred_check
        _
      $region10: #{tpu_custom_call.1} parent=5 // pred_check_branch
        %119 = sbr.rel (%p116) target = $region12
      $region11: #{tpu_custom_call.1} parent=5 // pred_region
        %s120 = ssub.s32 %s17, 1
        // Predicated region
        $region13: #{tpu_custom_call.1} parent=11 // pred_check
          %p121 = pneg %p78
        $region14: #{tpu_custom_call.1} parent=11 // pred_check_branch
          %123 = sbr.rel (%p121) target = $region16
        $region15: #{tpu_custom_call.1} parent=11 // pred_region
          %s125 = ssub.s32 1024, 1024
          %126 = vsyncadd [#allocation8], %s125
          %s127 = sshll.u32 [#allocation7], 4
          %s128 = int_to_ptr.vmem [resolvable:$true] %s127
          %133 = dma.hbm_to_vmem [thread:$0]  %s2, 1024, %s128, [#allocation8], 64, 64, 4
        $region16: #{tpu_custom_call.1} parent=11 // pred_fallthru
          _
      $region12: #{tpu_custom_call.1} parent=5 // pred_fallthru
        _
      %p134 = scmp.lt.s32.totalorder %s17, 4
      // Predicated region
      $region17: #{tpu_custom_call.1} parent=5 // pred_check
        %p135 = pneg %p134
      $region18: #{tpu_custom_call.1} parent=5 // pred_check_branch
        %137 = sbr.rel (%p135) target = $region20
      $region19: #{tpu_custom_call.1} parent=5 // pred_region
        // Predicated region
        $region21: #{tpu_custom_call.1} parent=19 // pred_check
          %p138 = pneg %p51
        $region22: #{tpu_custom_call.1} parent=19 // pred_check_branch
          %140 = sbr.rel (%p138) target = $region24
        $region23: #{tpu_custom_call.1} parent=19 // pred_region
          #allocation11 [shape = 'u32[6]{0}', space=smem, size = 0x18, scoped, tag = 'DMA stride descriptor']
          %s141 = sand.u32 %s41, 1
          %s142 = scalar_lea.sflag [#allocation5], %s141
          %s143 = sand.u32 %s41, 1
          %s144 = smul.addr %s143, 128
          %s145 = scalar_lea.vmem [#allocation4], %s144
          %s147 = ssub.s32 2048, 2048
          %148 = vsyncadd %s142, %s147
          %s149 = smul.addr %s24, 32
          %s150 = sadd.s32 %s25, %s149
          %s151 = smul.addr %s150, 64
          %s152 = scalar_lea.hbm %s1, %s151
          %s154 = sshll.u32 1, 14
          %s155 = sxor.u32 4294967295, %s154
          %s157 = sld [smem:[#allocation0]]
          %s158 = sadd.s32 2, %s157
          %s160 = sshll.u32 7, 26
          %s161 = sxor.u32 4294967295, %s160
          %s162 = sand.u32 0, %s161
          %s163 = sshll.u32 %s158, 26
          %s164 = sor.u32 %s162, %s163
          %s165 = sshll.u32 %s145, 4
          %s166 = int_to_ptr.vmem [resolvable:$true] %s165
          %172 = sst [smem:[#allocation11]] 4096
          %s173 = scalar_lea.smem [#allocation11], 1
          %174 = sst [smem:[%s173]] 1024
          %s175 = scalar_lea.smem [#allocation11], 2
          %176 = sst [smem:[%s175]] 16
          %s177 = scalar_lea.smem [#allocation11], 3
          %178 = sst [smem:[%s177]] 128
          %s179 = scalar_lea.smem [#allocation11], 4
          %180 = sst [smem:[%s179]] 64
          %s181 = scalar_lea.smem [#allocation11], 5
          %182 = sst [smem:[%s181]] 4
          %184 = dma.general %s152, 2048, %s166, %s142, 131072, [#allocation11], %s164, 0
        $region24: #{tpu_custom_call.1} parent=19 // pred_fallthru
          _
      $region20: #{tpu_custom_call.1} parent=5 // pred_fallthru
        _
      %p185 = scmp.le.s32.totalorder 1, %s17
      %p186 = scmp.lt.s32.totalorder %s17, 5
      %p187 = pnand %p185, %p186
      %p188 = pneg %p187
      // Predicated region
      $region25: #{tpu_custom_call.1} parent=5 // pred_check
        _
      $region26: #{tpu_custom_call.1} parent=5 // pred_check_branch
        %190 = sbr.rel (%p187) target = $region28
      $region27: #{tpu_custom_call.1} parent=5 // pred_region
        %s191 = ssub.s32 %s17, 1
        %s192 = sand.u32 %s44, 1
        %s193 = scalar_lea.sflag [#allocation5], %s192
        %s194 = sand.u32 %s44, 1
        %s195 = smul.addr %s194, 128
        %s196 = scalar_lea.vmem [#allocation4], %s195
        // Predicated region
        $region29: #{tpu_custom_call.1} parent=27 // pred_check
          %p197 = pneg %p57
        $region30: #{tpu_custom_call.1} parent=27 // pred_check_branch
          %199 = sbr.rel (%p197) target = $region32
        $region31: #{tpu_custom_call.1} parent=27 // pred_region
          %200 = dma.done %s193, 2048
        $region32: #{tpu_custom_call.1} parent=27 // pred_fallthru
          _
        // Predicated region
        $region33: #{tpu_custom_call.1} parent=27 // pred_check
          %p201 = pneg %p78
        $region34: #{tpu_custom_call.1} parent=27 // pred_check_branch
          %203 = sbr.rel (%p201) target = $region36
        $region35: #{tpu_custom_call.1} parent=27 // pred_region
          %204 = dma.done [#allocation8], 1024
        $region36: #{tpu_custom_call.1} parent=27 // pred_fallthru
          _
        %s205 = sand.u32 %s44, 1
        %s206 = scalar_lea.sflag [#allocation5], %s205
        %s207 = sand.u32 %s44, 1
        %s208 = smul.addr %s207, 128
        %s209 = scalar_lea.vmem [#allocation4], %s208
        %p210 = pneg %p57
        %p211 = pneg %p54
        %p212 = pneg %p78
        %p213 = pneg %p75
        %p214 = pneg %p106
        %p215 = pneg %p103
        %s216 = sand.u32 %s93, 1
        %s217 = scalar_lea.sflag [#allocation6], %s216
        %s218 = sand.u32 %s93, 1
        %s219 = smul.addr %s218, 128
        %s220 = scalar_lea.vmem [#allocation9], %s219
        %s222 = sld [smem:[#allocation3]]
        %v223 = vlaneseq
        %v224 = vand.u32 %v223, 127
        %s225 = smul.u32 %s27, 128
        %v226 = vstv %s225
        %v227 = vadd.s32 %v224, %v226
        %v228 = vld [vmem:[#allocation7] sm:$0xf]
        %v229 = vld [vmem:[#allocation7 + $0x4] sm:$0xf]
        %v230 = vld [vmem:[#allocation7 + $0x8] sm:$0xf]
        %v231 = vld [vmem:[#allocation7 + $0xc] sm:$0xf]
        %v232 = vld [vmem:[#allocation7 + $0x10] sm:$0xf]
        %v233 = vld [vmem:[#allocation7 + $0x14] sm:$0xf]
        %v234 = vld [vmem:[#allocation7 + $0x18] sm:$0xf]
        %v235 = vld [vmem:[#allocation7 + $0x1c] sm:$0xf]
        %v236 = vld [vmem:[#allocation7 + $0x20] sm:$0xf]
        %v237 = vld [vmem:[#allocation7 + $0x24] sm:$0xf]
        %v238 = vld [vmem:[#allocation7 + $0x28] sm:$0xf]
        %v239 = vld [vmem:[#allocation7 + $0x2c] sm:$0xf]
        %v240 = vld [vmem:[#allocation7 + $0x30] sm:$0xf]
        %v241 = vld [vmem:[#allocation7 + $0x34] sm:$0xf]
        %v242 = vld [vmem:[#allocation7 + $0x38] sm:$0xf]
        %v243 = vld [vmem:[#allocation7 + $0x3c] sm:$0xf]
        %v244 = vld [vmem:[%s196] sm:$0xf]
        %v245 = vld [vmem:[%s196 + $0x4] sm:$0xf]
        %v246 = vld [vmem:[%s196 + $0x8] sm:$0xf]
        %v247 = vld [vmem:[%s196 + $0xc] sm:$0xf]
        %v248 = vld [vmem:[%s196 + $0x10] sm:$0xf]
        %v249 = vld [vmem:[%s196 + $0x14] sm:$0xf]
        %v250 = vld [vmem:[%s196 + $0x18] sm:$0xf]
        %v251 = vld [vmem:[%s196 + $0x1c] sm:$0xf]
        %v252 = vld [vmem:[%s196 + $0x20] sm:$0xf]
        %v253 = vld [vmem:[%s196 + $0x24] sm:$0xf]
        %v254 = vld [vmem:[%s196 + $0x28] sm:$0xf]
        %v255 = vld [vmem:[%s196 + $0x2c] sm:$0xf]
        %v256 = vld [vmem:[%s196 + $0x30] sm:$0xf]
        %v257 = vld [vmem:[%s196 + $0x34] sm:$0xf]
        %v258 = vld [vmem:[%s196 + $0x38] sm:$0xf]
        %v259 = vld [vmem:[%s196 + $0x3c] sm:$0xf]
        %s260 = scalar_lea.vmem %s196, 64 [#allocation4]
        %v261 = vld [vmem:[%s260] sm:$0xf]
        %v262 = vld [vmem:[%s260 + $0x4] sm:$0xf]
        %v263 = vld [vmem:[%s260 + $0x8] sm:$0xf]
        %v264 = vld [vmem:[%s260 + $0xc] sm:$0xf]
        %v265 = vld [vmem:[%s260 + $0x10] sm:$0xf]
        %v266 = vld [vmem:[%s260 + $0x14] sm:$0xf]
        %v267 = vld [vmem:[%s260 + $0x18] sm:$0xf]
        %v268 = vld [vmem:[%s260 + $0x1c] sm:$0xf]
        %v269 = vld [vmem:[%s260 + $0x20] sm:$0xf]
        %v270 = vld [vmem:[%s260 + $0x24] sm:$0xf]
        %v271 = vld [vmem:[%s260 + $0x28] sm:$0xf]
        %v272 = vld [vmem:[%s260 + $0x2c] sm:$0xf]
        %v273 = vld [vmem:[%s260 + $0x30] sm:$0xf]
        %v274 = vld [vmem:[%s260 + $0x34] sm:$0xf]
        %v275 = vld [vmem:[%s260 + $0x38] sm:$0xf]
        %v276 = vld [vmem:[%s260 + $0x3c] sm:$0xf]
        %v293 = vunpack.c.l.b16 %v244
        %v294 = vunpack.c.l.b16 %v245
        %v295 = vunpack.c.l.b16 %v246
        %v296 = vunpack.c.l.b16 %v247
        %v297 = vunpack.c.l.b16 %v248
        %v298 = vunpack.c.l.b16 %v249
        %v299 = vunpack.c.l.b16 %v250
        %v300 = vunpack.c.l.b16 %v251
        %v301 = vunpack.c.l.b16 %v252
        %v302 = vunpack.c.l.b16 %v253
        %v303 = vunpack.c.l.b16 %v254
        %v304 = vunpack.c.l.b16 %v255
        %v305 = vunpack.c.l.b16 %v256
        %v306 = vunpack.c.l.b16 %v257
        %v307 = vunpack.c.l.b16 %v258
        %v308 = vunpack.c.l.b16 %v259
        %v309 = vpack.c.b16 %v294, %v293
        %v310 = vpack.c.b16 %v296, %v295
        %v311 = vpack.c.b16 %v298, %v297
        %v312 = vpack.c.b16 %v300, %v299
        %v313 = vpack.c.b16 %v302, %v301
        %v314 = vpack.c.b16 %v304, %v303
        %v315 = vpack.c.b16 %v306, %v305
        %v316 = vpack.c.b16 %v308, %v307
        %v341 = vunpack.c.l.b16 %v261
        %v342 = vunpack.c.l.b16 %v262
        %v343 = vunpack.c.l.b16 %v263
        %v344 = vunpack.c.l.b16 %v264
        %v345 = vunpack.c.l.b16 %v265
        %v346 = vunpack.c.l.b16 %v266
        %v347 = vunpack.c.l.b16 %v267
        %v348 = vunpack.c.l.b16 %v268
        %v349 = vunpack.c.l.b16 %v269
        %v350 = vunpack.c.l.b16 %v270
        %v351 = vunpack.c.l.b16 %v271
        %v352 = vunpack.c.l.b16 %v272
        %v353 = vunpack.c.l.b16 %v273
        %v354 = vunpack.c.l.b16 %v274
        %v355 = vunpack.c.l.b16 %v275
        %v356 = vunpack.c.l.b16 %v276
        %v357 = vpack.c.b16 %v342, %v341
        %v358 = vpack.c.b16 %v344, %v343
        %v359 = vpack.c.b16 %v346, %v345
        %v360 = vpack.c.b16 %v348, %v347
        %v361 = vpack.c.b16 %v350, %v349
        %v362 = vpack.c.b16 %v352, %v351
        %v363 = vpack.c.b16 %v354, %v353
        %v364 = vpack.c.b16 %v356, %v355
        %v389 = vunpack.c.l.b16 %v228
        %v390 = vunpack.c.l.b16 %v229
        %v391 = vunpack.c.l.b16 %v230
        %v392 = vunpack.c.l.b16 %v231
        %v393 = vunpack.c.l.b16 %v232
        %v394 = vunpack.c.l.b16 %v233
        %v395 = vunpack.c.l.b16 %v234
        %v396 = vunpack.c.l.b16 %v235
        %v397 = vunpack.c.l.b16 %v236
        %v398 = vunpack.c.l.b16 %v237
        %v399 = vunpack.c.l.b16 %v238
        %v400 = vunpack.c.l.b16 %v239
        %v401 = vunpack.c.l.b16 %v240
        %v402 = vunpack.c.l.b16 %v241
        %v403 = vunpack.c.l.b16 %v242
        %v404 = vunpack.c.l.b16 %v243
        %v405 = vpack.c.b16 %v390, %v389
        %v406 = vpack.c.b16 %v392, %v391
        %v407 = vpack.c.b16 %v394, %v393
        %v408 = vpack.c.b16 %v396, %v395
        %v409 = vpack.c.b16 %v398, %v397
        %v410 = vpack.c.b16 %v400, %v399
        %v411 = vpack.c.b16 %v402, %v401
        %v412 = vpack.c.b16 %v404, %v403
        %421 = vmatprep.subr.bf16.mxu0 %v364
        %422 = vmatpush1.bf16.msra.mxu0 %v316
        %423 = vmatprep.subr.bf16.mxu0 %v363
        %424 = vmatpush1.bf16.msra.mxu0 %v315
        %425 = vmatprep.subr.bf16.mxu0 %v362
        %426 = vmatpush1.bf16.msra.mxu0 %v314
        %427 = vmatprep.subr.bf16.mxu0 %v361
        %428 = vmatpush1.bf16.msra.mxu0 %v313
        %429 = vmatprep.subr.bf16.mxu0 %v360
        %430 = vmatpush1.bf16.msra.mxu0 %v312
        %431 = vmatprep.subr.bf16.mxu0 %v359
        %432 = vmatpush1.bf16.msra.mxu0 %v311
        %433 = vmatprep.subr.bf16.mxu0 %v358
        %434 = vmatpush1.bf16.msra.mxu0 %v310
        %435 = vmatprep.subr.bf16.mxu0 %v357
        %436 = vmatpush1.bf16.msra.mxu0 %v309
        %437 = vmatprep.subr.bf16.mxu0 0
        %438 = vmatpush2.bf16.msra.mxu0 0
        %439 = vmatprep.subr.bf16.mxu0 0
        %440 = vmatpush2.bf16.msra.mxu0 0
        %441 = vmatprep.subr.bf16.mxu0 0
        %442 = vmatpush2.bf16.msra.mxu0 0
        %443 = vmatprep.subr.bf16.mxu0 0
        %444 = vmatpush2.bf16.msra.mxu0 0
        %445 = vmatprep.subr.bf16.mxu0 0
        %446 = vmatpush2.bf16.msra.mxu0 0
        %447 = vmatprep.subr.bf16.mxu0 0
        %448 = vmatpush2.bf16.msra.mxu0 0
        %449 = vmatprep.subr.bf16.mxu0 0
        %450 = vmatpush2.bf16.msra.mxu0 0
        %451 = vmatprep.subr.bf16.mxu0 0
        %452 = vmatpush2.bf16.msra.mxu0 0
        %453 = vmatprep.mubr.bf16.mxu0 0
        %454 = vmatmul.mubr.bf16.gmra.mxu0 %v405
        %v455 = vpop.f32.mrf.mxu0
        %v456 = vadd.f32 0.0, %v455
        %v457 = vpop.f32.mrf.mxu0
        %v458 = vadd.f32 0.0, %v457
        %v459 = vpop.f32.mrf.mxu0
        %v460 = vadd.f32 0.0, %v459
        %v461 = vpop.f32.mrf.mxu0
        %v462 = vadd.f32 0.0, %v461
        %463 = vmatprep.mubr.bf16.mxu0 0
        %464 = vmatmul.mubr.bf16.gmra.mxu0 %v406
        %v465 = vpop.f32.mrf.mxu0
        %v466 = vadd.f32 0.0, %v465
        %v467 = vpop.f32.mrf.mxu0
        %v468 = vadd.f32 0.0, %v467
        %v469 = vpop.f32.mrf.mxu0
        %v470 = vadd.f32 0.0, %v469
        %v471 = vpop.f32.mrf.mxu0
        %v472 = vadd.f32 0.0, %v471
        %473 = vmatprep.mubr.bf16.mxu0 0
        %474 = vmatmul.mubr.bf16.gmra.mxu0 %v407
        %v475 = vpop.f32.mrf.mxu0
        %v476 = vadd.f32 0.0, %v475
        %v477 = vpop.f32.mrf.mxu0
        %v478 = vadd.f32 0.0, %v477
        %v479 = vpop.f32.mrf.mxu0
        %v480 = vadd.f32 0.0, %v479
        %v481 = vpop.f32.mrf.mxu0
        %v482 = vadd.f32 0.0, %v481
        %483 = vmatprep.mubr.bf16.mxu0 0
        %484 = vmatmul.mubr.bf16.gmra.mxu0 %v408
        %v485 = vpop.f32.mrf.mxu0
        %v486 = vadd.f32 0.0, %v485
        %v487 = vpop.f32.mrf.mxu0
        %v488 = vadd.f32 0.0, %v487
        %v489 = vpop.f32.mrf.mxu0
        %v490 = vadd.f32 0.0, %v489
        %v491 = vpop.f32.mrf.mxu0
        %v492 = vadd.f32 0.0, %v491
        %493 = vmatprep.mubr.bf16.mxu0 0
        %494 = vmatmul.mubr.bf16.gmra.mxu0 %v409
        %v495 = vpop.f32.mrf.mxu0
        %v496 = vadd.f32 0.0, %v495
        %v497 = vpop.f32.mrf.mxu0
        %v498 = vadd.f32 0.0, %v497
        %v499 = vpop.f32.mrf.mxu0
        %v500 = vadd.f32 0.0, %v499
        %v501 = vpop.f32.mrf.mxu0
        %v502 = vadd.f32 0.0, %v501
        %503 = vmatprep.mubr.bf16.mxu0 0
        %504 = vmatmul.mubr.bf16.gmra.mxu0 %v410
        %v505 = vpop.f32.mrf.mxu0
        %v506 = vadd.f32 0.0, %v505
        %v507 = vpop.f32.mrf.mxu0
        %v508 = vadd.f32 0.0, %v507
        %v509 = vpop.f32.mrf.mxu0
        %v510 = vadd.f32 0.0, %v509
        %v511 = vpop.f32.mrf.mxu0
        %v512 = vadd.f32 0.0, %v511
        %513 = vmatprep.mubr.bf16.mxu0 0
        %514 = vmatmul.mubr.bf16.gmra.mxu0 %v411
        %v515 = vpop.f32.mrf.mxu0
        %v516 = vadd.f32 0.0, %v515
        %v517 = vpop.f32.mrf.mxu0
        %v518 = vadd.f32 0.0, %v517
        %v519 = vpop.f32.mrf.mxu0
        %v520 = vadd.f32 0.0, %v519
        %v521 = vpop.f32.mrf.mxu0
        %v522 = vadd.f32 0.0, %v521
        %523 = vmatprep.mubr.bf16.mxu0 0
        %524 = vmatmul.mubr.bf16.gmra.mxu0 %v412
        %v525 = vpop.f32.mrf.mxu0
        %v526 = vadd.f32 0.0, %v525
        %v527 = vpop.f32.mrf.mxu0
        %v528 = vadd.f32 0.0, %v527
        %v529 = vpop.f32.mrf.mxu0
        %v530 = vadd.f32 0.0, %v529
        %v531 = vpop.f32.mrf.mxu0
        %v532 = vadd.f32 0.0, %v531
        %533 = vdwg.mxu0
        %v534 = vmul.u32 %v227, 2
        %v535 = vstv %s222
        %vm536 = vcmp.ge.s32.totalorder %v534, %v535
        %v537 = vsel %vm536, 1, 0
        %vm538 = vcmp.eq.s32.totalorder %v537, 1
        %v539 = vsel %vm538, -3.4028235e+38, %v456
        %v540 = vsel %vm538, -3.4028235e+38, %v460
        %v541 = vsel %vm538, -3.4028235e+38, %v466
        %v542 = vsel %vm538, -3.4028235e+38, %v470
        %v543 = vsel %vm538, -3.4028235e+38, %v476
        %v544 = vsel %vm538, -3.4028235e+38, %v480
        %v545 = vsel %vm538, -3.4028235e+38, %v486
        %v546 = vsel %vm538, -3.4028235e+38, %v490
        %v547 = vsel %vm538, -3.4028235e+38, %v496
        %v548 = vsel %vm538, -3.4028235e+38, %v500
        %v549 = vsel %vm538, -3.4028235e+38, %v506
        %v550 = vsel %vm538, -3.4028235e+38, %v510
        %v551 = vsel %vm538, -3.4028235e+38, %v516
        %v552 = vsel %vm538, -3.4028235e+38, %v520
        %v553 = vsel %vm538, -3.4028235e+38, %v526
        %v554 = vsel %vm538, -3.4028235e+38, %v530
        %v555 = vadd.s32 %v534, 1
        %vm556 = vcmp.ge.s32.totalorder %v555, %v535
        %v557 = vsel %vm556, 1, 0
        %vm558 = vcmp.eq.s32.totalorder %v557, 1
        %v559 = vsel %vm558, -3.4028235e+38, %v458
        %v560 = vsel %vm558, -3.4028235e+38, %v462
        %v561 = vsel %vm558, -3.4028235e+38, %v468
        %v562 = vsel %vm558, -3.4028235e+38, %v472
        %v563 = vsel %vm558, -3.4028235e+38, %v478
        %v564 = vsel %vm558, -3.4028235e+38, %v482
        %v565 = vsel %vm558, -3.4028235e+38, %v488
        %v566 = vsel %vm558, -3.4028235e+38, %v492
        %v567 = vsel %vm558, -3.4028235e+38, %v498
        %v568 = vsel %vm558, -3.4028235e+38, %v502
        %v569 = vsel %vm558, -3.4028235e+38, %v508
        %v570 = vsel %vm558, -3.4028235e+38, %v512
        %v571 = vsel %vm558, -3.4028235e+38, %v518
        %v572 = vsel %vm558, -3.4028235e+38, %v522
        %v573 = vsel %vm558, -3.4028235e+38, %v528
        %v574 = vsel %vm558, -3.4028235e+38, %v532
        %v575 = vsub.f32 %v559, %v539
        %v576 = vsub.f32 %v560, %v540
        %v577 = vsub.f32 %v561, %v541
        %v578 = vsub.f32 %v562, %v542
        %v579 = vsub.f32 %v563, %v543
        %v580 = vsub.f32 %v564, %v544
        %v581 = vsub.f32 %v565, %v545
        %v582 = vsub.f32 %v566, %v546
        %v583 = vsub.f32 %v567, %v547
        %v584 = vsub.f32 %v568, %v548
        %v585 = vsub.f32 %v569, %v549
        %v586 = vsub.f32 %v570, %v550
        %v587 = vsub.f32 %v571, %v551
        %v588 = vsub.f32 %v572, %v552
        %v589 = vsub.f32 %v573, %v553
        %v590 = vsub.f32 %v574, %v554
        %v591 = vmin.f32 %v575, 80.0
        %v592 = vmin.f32 %v576, 80.0
        %v593 = vmin.f32 %v577, 80.0
        %v594 = vmin.f32 %v578, 80.0
        %v595 = vmin.f32 %v579, 80.0
        %v596 = vmin.f32 %v580, 80.0
        %v597 = vmin.f32 %v581, 80.0
        %v598 = vmin.f32 %v582, 80.0
        %v599 = vmin.f32 %v583, 80.0
        %v600 = vmin.f32 %v584, 80.0
        %v601 = vmin.f32 %v585, 80.0
        %v602 = vmin.f32 %v586, 80.0
        %v603 = vmin.f32 %v587, 80.0
        %v604 = vmin.f32 %v588, 80.0
        %v605 = vmin.f32 %v589, 80.0
        %v606 = vmin.f32 %v590, 80.0
        %v607 = vmul.f32 %v591, 1.442695
        %v608 = vpow.pop %v607
        %v609 = vmul.f32 %v592, 1.442695
        %v610 = vpow.pop %v609
        %v611 = vmul.f32 %v593, 1.442695
        %v612 = vpow.pop %v611
        %v613 = vmul.f32 %v594, 1.442695
        %v614 = vpow.pop %v613
        %v615 = vmul.f32 %v595, 1.442695
        %v616 = vpow.pop %v615
        %v617 = vmul.f32 %v596, 1.442695
        %v618 = vpow.pop %v617
        %v619 = vmul.f32 %v597, 1.442695
        %v620 = vpow.pop %v619
        %v621 = vmul.f32 %v598, 1.442695
        %v622 = vpow.pop %v621
        %v623 = vmul.f32 %v599, 1.442695
        %v624 = vpow.pop %v623
        %v625 = vmul.f32 %v600, 1.442695
        %v626 = vpow.pop %v625
        %v627 = vmul.f32 %v601, 1.442695
        %v628 = vpow.pop %v627
        %v629 = vmul.f32 %v602, 1.442695
        %v630 = vpow.pop %v629
        %v631 = vmul.f32 %v603, 1.442695
        %v632 = vpow.pop %v631
        %v633 = vmul.f32 %v604, 1.442695
        %v634 = vpow.pop %v633
        %v635 = vmul.f32 %v605, 1.442695
        %v636 = vpow.pop %v635
        %v637 = vmul.f32 %v606, 1.442695
        %v638 = vpow.pop %v637
        %v639 = vadd.f32 %v608, 1.0
        %v640 = vadd.f32 %v610, 1.0
        %v641 = vadd.f32 %v612, 1.0
        %v642 = vadd.f32 %v614, 1.0
        %v643 = vadd.f32 %v616, 1.0
        %v644 = vadd.f32 %v618, 1.0
        %v645 = vadd.f32 %v620, 1.0
        %v646 = vadd.f32 %v622, 1.0
        %v647 = vadd.f32 %v624, 1.0
        %v648 = vadd.f32 %v626, 1.0
        %v649 = vadd.f32 %v628, 1.0
        %v650 = vadd.f32 %v630, 1.0
        %v651 = vadd.f32 %v632, 1.0
        %v652 = vadd.f32 %v634, 1.0
        %v653 = vadd.f32 %v636, 1.0
        %v654 = vadd.f32 %v638, 1.0
        %v655 = vrcp.pop %v639
        %v656 = vrcp.pop %v640
        %v657 = vrcp.pop %v641
        %v658 = vrcp.pop %v642
        %v659 = vrcp.pop %v643
        %v660 = vrcp.pop %v644
        %v661 = vrcp.pop %v645
        %v662 = vrcp.pop %v646
        %v663 = vrcp.pop %v647
        %v664 = vrcp.pop %v648
        %v665 = vrcp.pop %v649
        %v666 = vrcp.pop %v650
        %v667 = vrcp.pop %v651
        %v668 = vrcp.pop %v652
        %v669 = vrcp.pop %v653
        %v670 = vrcp.pop %v654
        %v671 = vunpack.c.l.bf16 %v244
        %v672 = vunpack.c.l.bf16 %v245
        %v673 = vunpack.c.l.bf16 %v246
        %v674 = vunpack.c.l.bf16 %v247
        %v675 = vunpack.c.l.bf16 %v248
        %v676 = vunpack.c.l.bf16 %v249
        %v677 = vunpack.c.l.bf16 %v250
        %v678 = vunpack.c.l.bf16 %v251
        %v679 = vunpack.c.l.bf16 %v252
        %v680 = vunpack.c.l.bf16 %v253
        %v681 = vunpack.c.l.bf16 %v254
        %v682 = vunpack.c.l.bf16 %v255
        %v683 = vunpack.c.l.bf16 %v256
        %v684 = vunpack.c.l.bf16 %v257
        %v685 = vunpack.c.l.bf16 %v258
        %v686 = vunpack.c.l.bf16 %v259
        %v687 = vmul.f32 %v671, %v655
        %v688 = vmul.f32 %v672, %v656
        %v689 = vmul.f32 %v673, %v657
        %v690 = vmul.f32 %v674, %v658
        %v691 = vmul.f32 %v675, %v659
        %v692 = vmul.f32 %v676, %v660
        %v693 = vmul.f32 %v677, %v661
        %v694 = vmul.f32 %v678, %v662
        %v695 = vmul.f32 %v679, %v663
        %v696 = vmul.f32 %v680, %v664
        %v697 = vmul.f32 %v681, %v665
        %v698 = vmul.f32 %v682, %v666
        %v699 = vmul.f32 %v683, %v667
        %v700 = vmul.f32 %v684, %v668
        %v701 = vmul.f32 %v685, %v669
        %v702 = vmul.f32 %v686, %v670
        %v703 = vunpack.c.l.bf16 %v261
        %v704 = vunpack.c.l.bf16 %v262
        %v705 = vunpack.c.l.bf16 %v263
        %v706 = vunpack.c.l.bf16 %v264
        %v707 = vunpack.c.l.bf16 %v265
        %v708 = vunpack.c.l.bf16 %v266
        %v709 = vunpack.c.l.bf16 %v267
        %v710 = vunpack.c.l.bf16 %v268
        %v711 = vunpack.c.l.bf16 %v269
        %v712 = vunpack.c.l.bf16 %v270
        %v713 = vunpack.c.l.bf16 %v271
        %v714 = vunpack.c.l.bf16 %v272
        %v715 = vunpack.c.l.bf16 %v273
        %v716 = vunpack.c.l.bf16 %v274
        %v717 = vunpack.c.l.bf16 %v275
        %v718 = vunpack.c.l.bf16 %v276
        %v719 = vsub.f32 1.0, %v655
        %v720 = vsub.f32 1.0, %v656
        %v721 = vsub.f32 1.0, %v657
        %v722 = vsub.f32 1.0, %v658
        %v723 = vsub.f32 1.0, %v659
        %v724 = vsub.f32 1.0, %v660
        %v725 = vsub.f32 1.0, %v661
        %v726 = vsub.f32 1.0, %v662
        %v727 = vsub.f32 1.0, %v663
        %v728 = vsub.f32 1.0, %v664
        %v729 = vsub.f32 1.0, %v665
        %v730 = vsub.f32 1.0, %v666
        %v731 = vsub.f32 1.0, %v667
        %v732 = vsub.f32 1.0, %v668
        %v733 = vsub.f32 1.0, %v669
        %v734 = vsub.f32 1.0, %v670
        %v735 = vmul.f32 %v703, %v719
        %v736 = vmul.f32 %v704, %v720
        %v737 = vmul.f32 %v705, %v721
        %v738 = vmul.f32 %v706, %v722
        %v739 = vmul.f32 %v707, %v723
        %v740 = vmul.f32 %v708, %v724
        %v741 = vmul.f32 %v709, %v725
        %v742 = vmul.f32 %v710, %v726
        %v743 = vmul.f32 %v711, %v727
        %v744 = vmul.f32 %v712, %v728
        %v745 = vmul.f32 %v713, %v729
        %v746 = vmul.f32 %v714, %v730
        %v747 = vmul.f32 %v715, %v731
        %v748 = vmul.f32 %v716, %v732
        %v749 = vmul.f32 %v717, %v733
        %v750 = vmul.f32 %v718, %v734
        %v751 = vadd.f32 %v687, %v735
        %v752 = vadd.f32 %v688, %v736
        %v753 = vadd.f32 %v689, %v737
        %v754 = vadd.f32 %v690, %v738
        %v755 = vadd.f32 %v691, %v739
        %v756 = vadd.f32 %v692, %v740
        %v757 = vadd.f32 %v693, %v741
        %v758 = vadd.f32 %v694, %v742
        %v759 = vadd.f32 %v695, %v743
        %v760 = vadd.f32 %v696, %v744
        %v761 = vadd.f32 %v697, %v745
        %v762 = vadd.f32 %v698, %v746
        %v763 = vadd.f32 %v699, %v747
        %v764 = vadd.f32 %v700, %v748
        %v765 = vadd.f32 %v701, %v749
        %v766 = vadd.f32 %v702, %v750
        %767 = vst [vmem:[%s220] sm:$0xff] %v751
        %768 = vst [vmem:[%s220 + $0x8] sm:$0xff] %v752
        %769 = vst [vmem:[%s220 + $0x10] sm:$0xff] %v753
        %770 = vst [vmem:[%s220 + $0x18] sm:$0xff] %v754
        %771 = vst [vmem:[%s220 + $0x20] sm:$0xff] %v755
        %772 = vst [vmem:[%s220 + $0x28] sm:$0xff] %v756
        %773 = vst [vmem:[%s220 + $0x30] sm:$0xff] %v757
        %774 = vst [vmem:[%s220 + $0x38] sm:$0xff] %v758
        %775 = vst [vmem:[%s220 + $0x40] sm:$0xff] %v759
        %776 = vst [vmem:[%s220 + $0x48] sm:$0xff] %v760
        %777 = vst [vmem:[%s220 + $0x50] sm:$0xff] %v761
        %778 = vst [vmem:[%s220 + $0x58] sm:$0xff] %v762
        %779 = vst [vmem:[%s220 + $0x60] sm:$0xff] %v763
        %780 = vst [vmem:[%s220 + $0x68] sm:$0xff] %v764
        %781 = vst [vmem:[%s220 + $0x70] sm:$0xff] %v765
        %782 = vst [vmem:[%s220 + $0x78] sm:$0xff] %v766
        %s783 = sand.u32 %s93, 1
        %s784 = scalar_lea.sflag [#allocation6], %s783
        %s785 = sand.u32 %s93, 1
        %s786 = smul.addr %s785, 128
        %s787 = scalar_lea.vmem [#allocation9], %s786
        // Predicated region
        $region37: #{tpu_custom_call.1} parent=27 // pred_check
          %p788 = pneg %p103
        $region38: #{tpu_custom_call.1} parent=27 // pred_check_branch
          %790 = sbr.rel (%p788) target = $region40
        $region39: #{tpu_custom_call.1} parent=27 // pred_region
          %s792 = ssub.s32 2048, 2048
          %793 = vsyncadd %s784, %s792
          %s794 = smul.addr %s26, 32
          %s795 = sadd.s32 %s27, %s794
          %s796 = smul.addr %s795, 128
          %s797 = scalar_lea.hbm %s3, %s796
          %s798 = sshll.u32 %s787, 4
          %s799 = int_to_ptr.vmem [resolvable:$true] %s798
          %804 = dma.vmem_to_hbm [thread:$0]  %s799, 2048, %s797, %s784, 128, 256, 8
        $region40: #{tpu_custom_call.1} parent=27 // pred_fallthru
          _
      $region28: #{tpu_custom_call.1} parent=5 // pred_fallthru
        _
      %p805 = scmp.le.s32.totalorder 2, %s17
      // Predicated region
      $region41: #{tpu_custom_call.1} parent=5 // pred_check
        %p806 = pneg %p805
      $region42: #{tpu_custom_call.1} parent=5 // pred_check_branch
        %808 = sbr.rel (%p806) target = $region44
      $region43: #{tpu_custom_call.1} parent=5 // pred_region
        %s809 = ssub.s32 %s17, 2
        // Predicated region
        $region45: #{tpu_custom_call.1} parent=43 // pred_check
          %p810 = pneg %p109
        $region46: #{tpu_custom_call.1} parent=43 // pred_check_branch
          %812 = sbr.rel (%p810) target = $region48
        $region47: #{tpu_custom_call.1} parent=43 // pred_region
          %s813 = sand.u32 %s94, 1
          %s814 = scalar_lea.sflag [#allocation6], %s813
          %s815 = sand.u32 %s94, 1
          %s816 = smul.addr %s815, 128
          %s817 = scalar_lea.vmem [#allocation9], %s816
          %818 = dma.done %s814, 2048
        $region48: #{tpu_custom_call.1} parent=43 // pred_fallthru
          _
      $region44: #{tpu_custom_call.1} parent=5 // pred_fallthru
        _
    $region6: #{tpu_custom_call.1} parent=1 // loop_footer
      %s21 = sadd.s32 1, %s17
    $region7: #{tpu_custom_call.1} parent=1 // loop_footer_branch
      %16 = sbr.rel target = $region3
    $region8: #{tpu_custom_call.1} parent=1 // loop_exit
      _
    %819 = vsyncpa [#allocation5], 1
    %s820 = scalar_lea.sflag [#allocation5], 1
    %821 = vsyncpa %s820, 1
    %822 = vsyncpa [#allocation8], 1
    %823 = vsyncpa [#allocation6], 1
    %s824 = scalar_lea.sflag [#allocation6], 1
    %825 = vsyncpa %s824, 1

</llo_original>
